<compile_context>
chip_gen: v6e
topology: v6e:2x2x1
jax: 0.10.0
libtpu: 0.0.40
codegen_flags: <defaults>
</compile_context>

<pallas_src>
import functools

import jax
import jax.numpy as jnp
from jax.experimental import pallas as pl
from jax.experimental.pallas import tpu as pltpu

# ----------------------- scaled-down hyperparameters -----------------------
DIM = 32
STATE_DIM = 16
KERNEL_SIZE = 7
EXPANSION = 2
NUM_HEADS = 4
NUM_GROUPS = 1
NUM_EXPERTS = 4                      # unused: NestedLinear treated as dense
INNER_DIM = DIM * EXPANSION          # 64
HEAD_DIM = INNER_DIM // NUM_HEADS    # 16
GN = NUM_GROUPS * STATE_DIM          # 16
PAD = KERNEL_SIZE // 2               # 3

BATCH = 2
SEQ = 16
TM = 16                              # rows per grid step (multiple of SEQ and of 8)

# ---------------- packed projection layout (in-kernel intermediate) --------
OFF_Z = 0                            # z            [0, 64)
OFF_B = INNER_DIM                    # B            [64, 80)
OFF_C = OFF_B + GN                   # C            [80, 96)
OFF_DT = OFF_C + GN                  # dt fwd|bwd   [96, 104)
OFF_X = 128                          # x            [128, 192)  (128-lane aligned)
PROJ_W = OFF_X + INNER_DIM           # 192


# --------------------------------- kernel ----------------------------------
def hydra_kernel(u_ref, w_all_ref, w_conv_ref, conv_b_ref, dt_bias_ref,
                 z_ref, x_ref, b_ref, c_ref, dt_ref, *, seq_len):
    f32, bf16 = jnp.float32, jnp.bfloat16
    tm = u_ref.shape[0]                                   # rows in this tile

    # ---- fused z|B|C|dt|x projection: one MXU matmul, bf16 in / f32 acc -------
    proj = jnp.dot(u_ref[...], w_all_ref[...],
                   preferred_element_type=f32)            # (tm, PROJ_W) f32

    # ---- softplus(delta + delta_bias), bias added on the VPU in f32 ----------
    dt = proj[:, OFF_DT:OFF_DT + 2 * NUM_HEADS] + dt_bias_ref[...]
    dt = jnp.maximum(dt, 0.0) + jnp.log1p(jnp.exp(-jnp.abs(dt)))

    # ---- Conv1d('same') over the sequence axis: 7 accumulating per-tap matmuls
    # Tiles hold whole sequences (TM % seq_len == 0), so sequence shifts are
    # pltpu.roll within the tile; taps falling outside [0, L) are masked to zero.
    x = proj[:, OFF_X:OFF_X + INNER_DIM]                  # (tm, E) f32, lane-aligned
    pos = jax.lax.broadcasted_iota(jnp.int32, (tm, 1), 0) % seq_len
    acc = jnp.broadcast_to(conv_b_ref[...], (tm, INNER_DIM))   # conv bias, f32
    for k in range(KERNEL_SIZE):                          # static unroll
        s = k - PAD                                       # shift in [-PAD, PAD]
        shifted = x if s == 0 else pltpu.roll(x, shift=(-s) % tm, axis=0)
        valid = jnp.logical_and(pos + s >= 0, pos + s < seq_len)
        tap = jnp.where(valid, shifted, 0.0).astype(bf16)
        acc = acc + jnp.dot(tap, w_conv_ref[k], preferred_element_type=f32)
    xc = acc * pl.reciprocal(1.0 + jnp.exp(-acc), approx=True)   # SiLU (EUP recip)

    # ---- per-field stores (no dead lanes, no wrapper repack pass) -------------
    z_ref[...] = proj[:, OFF_Z:OFF_Z + INNER_DIM].astype(z_ref.dtype)
    x_ref[...] = xc.astype(x_ref.dtype)
    b_ref[...] = proj[:, OFF_B:OFF_B + GN].astype(b_ref.dtype)
    c_ref[...] = proj[:, OFF_C:OFF_C + GN].astype(c_ref.dtype)
    dt_ref[...] = dt


# --------------------------------- wrapper ---------------------------------
def nested_hydra_forward(u, token_mask, packed, params, *, tm=TM):
    batch, seq_len, dim = u.shape
    assert token_mask.shape == (batch, seq_len)
    m = batch * seq_len
    assert tm % seq_len == 0 and m % tm == 0, "tile must hold whole sequences"
    u_flat = u.reshape(m, dim).astype(jnp.bfloat16)       # bf16 HBM read

    z, xc, Bm, Cm, dt = pl.pallas_call(
        functools.partial(hydra_kernel, seq_len=seq_len),
        grid=(m // tm,),
        out_shape=(
            jax.ShapeDtypeStruct((m, INNER_DIM), jnp.bfloat16),      # z
            jax.ShapeDtypeStruct((m, INNER_DIM), jnp.bfloat16),      # silu(conv(x))
            jax.ShapeDtypeStruct((m, GN), jnp.bfloat16),             # B
            jax.ShapeDtypeStruct((m, GN), jnp.bfloat16),             # C
            jax.ShapeDtypeStruct((m, 2 * NUM_HEADS), jnp.float32),   # dt fwd|bwd
        ),
        in_specs=[
            pl.BlockSpec((tm, dim), lambda i: (i, 0)),                       # u (streamed)
            pl.BlockSpec((DIM, PROJ_W), lambda i: (0, 0)),                   # w_all (resident)
            pl.BlockSpec((KERNEL_SIZE, INNER_DIM, INNER_DIM),
                         lambda i: (0, 0, 0)),                               # w_conv (resident)
            pl.BlockSpec((1, INNER_DIM), lambda i: (0, 0)),                  # conv bias f32
            pl.BlockSpec((1, 2 * NUM_HEADS), lambda i: (0, 0)),              # delta bias f32
        ],
        out_specs=(
            pl.BlockSpec((tm, INNER_DIM), lambda i: (i, 0)),
            pl.BlockSpec((tm, INNER_DIM), lambda i: (i, 0)),
            pl.BlockSpec((tm, GN), lambda i: (i, 0)),
            pl.BlockSpec((tm, GN), lambda i: (i, 0)),
            pl.BlockSpec((tm, 2 * NUM_HEADS), lambda i: (i, 0)),
        ),
        compiler_params=pltpu.CompilerParams(dimension_semantics=("parallel",)),
    )(u_flat, packed["w_all"], packed["w_conv"], packed["conv_b"], packed["dt_bias"])

    z = z.reshape(batch, seq_len, INNER_DIM)
    xc = xc.reshape(batch, seq_len, INNER_DIM)
    Bm = Bm.reshape(batch, seq_len, GN)
    Cm = Cm.reshape(batch, seq_len, GN)
    dt = dt.reshape(batch, seq_len, 2 * NUM_HEADS)

    # delta = cat([delta_fwd, flip_seq(delta_bwd)], dim=0); softplus(+bias) was applied
    # in-kernel (elementwise, commutes with the flip).
    delta = jnp.concatenate(
        [dt[..., :NUM_HEADS], jnp.flip(dt[..., NUM_HEADS:], axis=1)], axis=0)
    A = -jnp.exp(params["log_A"])                                    # (H,)
    init_state = jnp.tile(params["init_state"], (batch, 1, 1))       # (B*H, hd, N)
    return dict(z=z, x=xc, B=Bm, C=Cm, delta=delta, A=A, init_state=init_state)


# ---------------------- parameter init & packing ---------------------------
def init_params(key):
    ks = jax.random.split(key, 8)
    s = lambda fan_in: 1.0 / jnp.sqrt(jnp.float32(fan_in))
    wz = jax.random.normal(ks[0], (DIM, INNER_DIM), jnp.float32) * s(DIM)
    wx = jax.random.normal(ks[1], (DIM, INNER_DIM), jnp.float32) * s(DIM)
    wb = jax.random.normal(ks[2], (DIM, GN), jnp.float32) * s(DIM)
    wc = jax.random.normal(ks[3], (DIM, GN), jnp.float32) * s(DIM)
    wd = jax.random.normal(ks[4], (DIM, 2 * NUM_HEADS), jnp.float32) * s(DIM)

    # Conv1d weight in torch layout (Cout, Cin, K); bias (Cout,)
    conv_w = jax.random.normal(ks[5], (INNER_DIM, INNER_DIM, KERNEL_SIZE),
                               jnp.float32) * s(INNER_DIM * KERNEL_SIZE)
    conv_b = jax.random.normal(ks[6], (INNER_DIM,), jnp.float32) * 0.01

    # delta_bias: inverse-softplus of a log-uniform sample in delta_range.
    # (reference's log(-expm1(delta)) is NaN for delta>0; use log(-expm1(-delta)))
    lo, hi = 1e-3, 1e-1
    delta = jnp.exp(jax.random.uniform(ks[7], (NUM_HEADS,), jnp.float32)
                    * (jnp.log(hi) - jnp.log(lo)) + jnp.log(lo))
    delta = jnp.clip(delta, 1e-4)
    delta_bias = delta + jnp.log(-jnp.expm1(-delta))

    log_A = jnp.zeros((NUM_HEADS,), jnp.float32)          # torch.ones(H).log()
    init_state = jnp.zeros((NUM_HEADS, HEAD_DIM, STATE_DIM), jnp.float32)

    return dict(wz=wz, wx=wx, wb=wb, wc=wc,
                wd_fwd=wd[:, :NUM_HEADS], wd_bwd=wd[:, NUM_HEADS:],
                conv_w=conv_w, conv_b=conv_b, delta_bias=delta_bias,
                log_A=log_A, init_state=init_state)


def pack_params(p):
    """One-time packing into the fused kernel operands."""
    f32 = jnp.float32
    # Fused projection weight (DIM, PROJ_W); x block at 128-lane-aligned offset.
    w_all = jnp.zeros((DIM, PROJ_W), f32)
    w_all = w_all.at[:, OFF_Z:OFF_Z + INNER_DIM].set(p["wz"])
    w_all = w_all.at[:, OFF_B:OFF_B + GN].set(p["wb"])
    w_all = w_all.at[:, OFF_C:OFF_C + GN].set(p["wc"])
    w_all = w_all.at[:, OFF_DT:OFF_DT + NUM_HEADS].set(p["wd_fwd"])
    w_all = w_all.at[:, OFF_DT + NUM_HEADS:OFF_DT + 2 * NUM_HEADS].set(p["wd_bwd"])
    w_all = w_all.at[:, OFF_X:OFF_X + INNER_DIM].set(p["wx"])

    # Conv1d as per-tap matrices: torch (Cout, Cin, K) -> (K, Cin, Cout)
    w_conv = jnp.transpose(p["conv_w"], (2, 1, 0))

    # Biases kept in f32, added on the VPU in-kernel.
    conv_b = p["conv_b"][None, :]                                     # (1, E)
    dt_bias = jnp.concatenate([p["delta_bias"], p["delta_bias"]])[None, :]  # (1, 2H)

    return dict(w_all=w_all.astype(jnp.bfloat16),
                w_conv=w_conv.astype(jnp.bfloat16),
                conv_b=conv_b.astype(f32),
                dt_bias=dt_bias.astype(f32))


# --------------------------- pure-JAX reference -----------------------------
def reference_forward(u, params):
    batch, seq_len, _ = u.shape
    hp = jax.lax.Precision.HIGHEST
    z = jnp.einsum("bld,de->ble", u, params["wz"], precision=hp)
    x = jnp.einsum("bld,de->ble", u, params["wx"], precision=hp)
    Bm = jnp.einsum("bld,dn->bln", u, params["wb"], precision=hp)
    Cm = jnp.einsum("bld,dn->bln", u, params["wc"], precision=hp)
    d_f = jnp.einsum("bld,dh->blh", u, params["wd_fwd"], precision=hp)
    d_b = jnp.einsum("bld,dh->blh", u, params["wd_bwd"], precision=hp)

    delta = jnp.concatenate([d_f, jnp.flip(d_b, axis=1)], axis=0)
    delta = delta + params["delta_bias"][None, None, :]
    delta = jnp.maximum(delta, 0.0) + jnp.log1p(jnp.exp(-jnp.abs(delta)))

    x_pad = jnp.pad(x, ((0, 0), (PAD, PAD), (0, 0)))
    y = jnp.zeros_like(x) + params["conv_b"][None, None, :]
    for k in range(KERNEL_SIZE):
        y = y + jnp.einsum("blc,oc->blo", x_pad[:, k:k + seq_len, :],
                           params["conv_w"][:, :, k], precision=hp)
    xc = y * jax.nn.sigmoid(y)

    A = -jnp.exp(params["log_A"])
    init_state = jnp.tile(params["init_state"], (batch, 1, 1))
    return dict(z=z, x=xc, B=Bm, C=Cm, delta=delta, A=A, init_state=init_state)


if __name__ == "__main__":
    key = jax.random.PRNGKey(0)
    k_u, k_p = jax.random.split(key)
    u = jax.random.normal(k_u, (BATCH, SEQ, DIM), jnp.float32)
    token_mask = jnp.ones((BATCH, SEQ), jnp.bool_)
    params = init_params(k_p)
    packed = pack_params(params)

    out = nested_hydra_forward(u, token_mask, packed, params)
    out = jax.block_until_ready(out)

    # shape checks
    assert out["z"].shape == (BATCH, SEQ, INNER_DIM)
    assert out["x"].shape == (BATCH, SEQ, INNER_DIM)
    assert out["B"].shape == (BATCH, SEQ, GN)
    assert out["C"].shape == (BATCH, SEQ, GN)
    assert out["delta"].shape == (2 * BATCH, SEQ, NUM_HEADS)
    assert out["A"].shape == (NUM_HEADS,)
    assert out["init_state"].shape == (BATCH * NUM_HEADS, HEAD_DIM, STATE_DIM)
    assert bool(jnp.all(jnp.isfinite(out["x"].astype(jnp.float32))))

    # numeric check vs. pure-JAX f32 reference (kernel uses bf16 MXU inputs and bf16
    # z/x/B/C outputs, f32 accumulation -> generous tolerance)
    ref = reference_forward(u, params)
    for name in ("z", "x", "B", "C", "delta"):
        err = float(jnp.max(jnp.abs(out[name].astype(jnp.float32) - ref[name])))
        assert err < 0.2, f"{name}: max abs err {err}"

    print("KERNEL_OK")
</pallas_src>

<mosaic_0001>
module attributes {stable_mosaic.version = 11 : i64} {
  func.func @hydra_kernel(%arg0: i32, %arg1: memref<16x32xbf16, #tpu.memory_space<vmem>>, %arg2: memref<32x192xbf16, #tpu.memory_space<vmem>>, %arg3: memref<7x64x64xbf16, #tpu.memory_space<vmem>>, %arg4: memref<1x64xf32, #tpu.memory_space<vmem>>, %arg5: memref<1x8xf32, #tpu.memory_space<vmem>>, %arg6: memref<16x64xbf16, #tpu.memory_space<vmem>>, %arg7: memref<16x64xbf16, #tpu.memory_space<vmem>>, %arg8: memref<16x16xbf16, #tpu.memory_space<vmem>>, %arg9: memref<16x16xbf16, #tpu.memory_space<vmem>>, %arg10: memref<16x8xf32, #tpu.memory_space<vmem>>) attributes {dimension_semantics = [#tpu.dimension_semantics<parallel>], iteration_bounds = array<i64: 2>, scalar_prefetch = 0 : i64, scratch_operands = 0 : i64, tpu.core_type = #tpu.core_type<tc>, window_params = [{transform_indices = @transform_0, window_bounds = array<i64: 16, 32>}, {pipeline_mode = #tpu.pipeline_mode<synchronous>, transform_indices = @transform_1, window_bounds = array<i64: 32, 192>}, {pipeline_mode = #tpu.pipeline_mode<synchronous>, transform_indices = @transform_2, window_bounds = array<i64: 7, 64, 64>}, {pipeline_mode = #tpu.pipeline_mode<synchronous>, transform_indices = @transform_3, window_bounds = array<i64: 1, 64>}, {pipeline_mode = #tpu.pipeline_mode<synchronous>, transform_indices = @transform_4, window_bounds = array<i64: 1, 8>}, {transform_indices = @transform_5, window_bounds = array<i64: 16, 64>}, {transform_indices = @transform_6, window_bounds = array<i64: 16, 64>}, {transform_indices = @transform_7, window_bounds = array<i64: 16, 16>}, {transform_indices = @transform_8, window_bounds = array<i64: 16, 16>}, {transform_indices = @transform_9, window_bounds = array<i64: 16, 8>}]} {
    %c0 = arith.constant 0 : index
    %c0_0 = arith.constant 0 : index
    %0 = vector.load %arg1[%c0, %c0_0] : memref<16x32xbf16, #tpu.memory_space<vmem>>, vector<16x32xbf16>
    %c0_1 = arith.constant 0 : index
    %c0_2 = arith.constant 0 : index
    %1 = vector.load %arg2[%c0_1, %c0_2] : memref<32x192xbf16, #tpu.memory_space<vmem>>, vector<32x192xbf16>
    %cst = arith.constant dense<0.000000e+00> : vector<16x192xf32>
    %2 = tpu.matmul %0, %1, %cst {dimension_numbers = #tpu.dot_dimension_numbers<[1], [0], [0], [1], [0, 0, 1, 1], [], []>} : vector<16x32xbf16>, vector<32x192xbf16>, vector<16x192xf32> -> vector<16x192xf32>
    %3 = vector.extract_strided_slice %2 {offsets = [0, 96], sizes = [16, 8], strides = [1, 1]} : vector<16x192xf32> to vector<16x8xf32>
    %c0_3 = arith.constant 0 : index
    %c0_4 = arith.constant 0 : index
    %4 = vector.load %arg5[%c0_3, %c0_4] : memref<1x8xf32, #tpu.memory_space<vmem>>, vector<1x8xf32>
    %5 = vector.broadcast %4 : vector<1x8xf32> to vector<16x8xf32>
    %6 = arith.addf %3, %5 : vector<16x8xf32>
    %cst_5 = arith.constant 0.000000e+00 : f32
    %7 = vector.broadcast %cst_5 : f32 to vector<16x8xf32>
    %8 = arith.maximumf %6, %7 : vector<16x8xf32>
    %9 = math.absf %6 : vector<16x8xf32>
    %cst_6 = arith.constant 0.000000e+00 : f32
    %10 = vector.broadcast %cst_6 : f32 to vector<16x8xf32>
    %11 = arith.subf %10, %9 : vector<16x8xf32>
    %12 = math.exp %11 : vector<16x8xf32>
    %13 = math.log1p %12 : vector<16x8xf32>
    %14 = arith.addf %8, %13 : vector<16x8xf32>
    %15 = vector.extract_strided_slice %2 {offsets = [0, 128], sizes = [16, 64], strides = [1, 1]} : vector<16x192xf32> to vector<16x64xf32>
    %16 = tpu.iota {dimensions = array<i32: 0>} : vector<16x1xi32>
    %c16_i32 = arith.constant 16 : i32
    %c0_i32 = arith.constant 0 : i32
    %17 = arith.cmpi eq, %c16_i32, %c0_i32 : i32
    %c1_i32 = arith.constant 1 : i32
    %18 = arith.select %17, %c1_i32, %c16_i32 : i32
    %19 = vector.broadcast %18 : i32 to vector<16x1xi32>
    %20 = arith.remsi %16, %19 : vector<16x1xi32>
    %c0_i32_7 = arith.constant 0 : i32
    %21 = vector.broadcast %c0_i32_7 : i32 to vector<16x1xi32>
    %22 = arith.cmpi ne, %20, %21 : vector<16x1xi32>
    %c0_i32_8 = arith.constant 0 : i32
    %23 = vector.broadcast %c0_i32_8 : i32 to vector<16x1xi32>
    %24 = arith.cmpi slt, %20, %23 : vector<16x1xi32>
    %c0_i32_9 = arith.constant 0 : i32
    %25 = arith.cmpi slt, %18, %c0_i32_9 : i32
    %26 = vector.broadcast %25 : i1 to vector<16x1xi1>
    %27 = vector.broadcast %26 : vector<16x1xi1> to vector<16x1xi1>
    %28 = arith.xori %24, %27 : vector<16x1xi1>
    %29 = arith.andi %28, %22 : vector<16x1xi1>
    %30 = vector.broadcast %18 : i32 to vector<16x1xi32>
    %31 = arith.addi %20, %30 : vector<16x1xi32>
    %32 = arith.select %29, %31, %20 : vector<16x1xi1>, vector<16x1xi32>
    %c0_10 = arith.constant 0 : index
    %c0_11 = arith.constant 0 : index
    %33 = vector.load %arg4[%c0_10, %c0_11] : memref<1x64xf32, #tpu.memory_space<vmem>>, vector<1x64xf32>
    %34 = vector.shape_cast %33 : vector<1x64xf32> to vector<1x64xf32>
    %35 = vector.broadcast %34 : vector<1x64xf32> to vector<16x64xf32>
    %c3_i32 = arith.constant 3 : i32
    %36 = tpu.dynamic_rotate %15 by %c3_i32 dim 0 : vector<16x64xf32>, i32 -> vector<16x64xf32>
    %c-3_i32 = arith.constant -3 : i32
    %37 = vector.broadcast %c-3_i32 : i32 to vector<16x1xi32>
    %38 = arith.addi %32, %37 : vector<16x1xi32>
    %c0_i32_12 = arith.constant 0 : i32
    %39 = vector.broadcast %c0_i32_12 : i32 to vector<16x1xi32>
    %40 = arith.cmpi sge, %38, %39 : vector<16x1xi32>
    %c-3_i32_13 = arith.constant -3 : i32
    %41 = vector.broadcast %c-3_i32_13 : i32 to vector<16x1xi32>
    %42 = arith.addi %32, %41 : vector<16x1xi32>
    %c16_i32_14 = arith.constant 16 : i32
    %43 = vector.broadcast %c16_i32_14 : i32 to vector<16x1xi32>
    %44 = arith.cmpi slt, %42, %43 : vector<16x1xi32>
    %45 = arith.andi %40, %44 : vector<16x1xi1>
    %cst_15 = arith.constant 0.000000e+00 : f32
    %46 = vector.shape_cast %45 : vector<16x1xi1> to vector<16x1xi1>
    %47 = vector.broadcast %46 : vector<16x1xi1> to vector<16x64xi1>
    %48 = vector.broadcast %cst_15 : f32 to vector<16x64xf32>
    %49 = arith.select %47, %36, %48 : vector<16x64xi1>, vector<16x64xf32>
    %50 = arith.truncf %49 : vector<16x64xf32> to vector<16x64xbf16>
    %c0_16 = arith.constant 0 : index
    %c0_17 = arith.constant 0 : index
    %c0_18 = arith.constant 0 : index
    %51 = vector.load %arg3[%c0_16, %c0_17, %c0_18] : memref<7x64x64xbf16, #tpu.memory_space<vmem>>, vector<1x64x64xbf16>
    %52 = vector.shape_cast %51 : vector<1x64x64xbf16> to vector<64x64xbf16>
    %cst_19 = arith.constant dense<0.000000e+00> : vector<16x64xf32>
    %53 = tpu.matmul %50, %52, %cst_19 {dimension_numbers = #tpu.dot_dimension_numbers<[1], [0], [0], [1], [0, 0, 1, 1], [], []>} : vector<16x64xbf16>, vector<64x64xbf16>, vector<16x64xf32> -> vector<16x64xf32>
    %54 = arith.addf %35, %53 : vector<16x64xf32>
    %c2_i32 = arith.constant 2 : i32
    %55 = tpu.dynamic_rotate %15 by %c2_i32 dim 0 : vector<16x64xf32>, i32 -> vector<16x64xf32>
    %c-2_i32 = arith.constant -2 : i32
    %56 = vector.broadcast %c-2_i32 : i32 to vector<16x1xi32>
    %57 = arith.addi %32, %56 : vector<16x1xi32>
    %c0_i32_20 = arith.constant 0 : i32
    %58 = vector.broadcast %c0_i32_20 : i32 to vector<16x1xi32>
    %59 = arith.cmpi sge, %57, %58 : vector<16x1xi32>
    %c-2_i32_21 = arith.constant -2 : i32
    %60 = vector.broadcast %c-2_i32_21 : i32 to vector<16x1xi32>
    %61 = arith.addi %32, %60 : vector<16x1xi32>
    %c16_i32_22 = arith.constant 16 : i32
    %62 = vector.broadcast %c16_i32_22 : i32 to vector<16x1xi32>
    %63 = arith.cmpi slt, %61, %62 : vector<16x1xi32>
    %64 = arith.andi %59, %63 : vector<16x1xi1>
    %cst_23 = arith.constant 0.000000e+00 : f32
    %65 = vector.shape_cast %64 : vector<16x1xi1> to vector<16x1xi1>
    %66 = vector.broadcast %65 : vector<16x1xi1> to vector<16x64xi1>
    %67 = vector.broadcast %cst_23 : f32 to vector<16x64xf32>
    %68 = arith.select %66, %55, %67 : vector<16x64xi1>, vector<16x64xf32>
    %69 = arith.truncf %68 : vector<16x64xf32> to vector<16x64xbf16>
    %c1 = arith.constant 1 : index
    %c0_24 = arith.constant 0 : index
    %c0_25 = arith.constant 0 : index
    %70 = vector.load %arg3[%c1, %c0_24, %c0_25] : memref<7x64x64xbf16, #tpu.memory_space<vmem>>, vector<1x64x64xbf16>
    %71 = vector.shape_cast %70 : vector<1x64x64xbf16> to vector<64x64xbf16>
    %cst_26 = arith.constant dense<0.000000e+00> : vector<16x64xf32>
    %72 = tpu.matmul %69, %71, %cst_26 {dimension_numbers = #tpu.dot_dimension_numbers<[1], [0], [0], [1], [0, 0, 1, 1], [], []>} : vector<16x64xbf16>, vector<64x64xbf16>, vector<16x64xf32> -> vector<16x64xf32>
    %73 = arith.addf %54, %72 : vector<16x64xf32>
    %c1_i32_27 = arith.constant 1 : i32
    %74 = tpu.dynamic_rotate %15 by %c1_i32_27 dim 0 : vector<16x64xf32>, i32 -> vector<16x64xf32>
    %c-1_i32 = arith.constant -1 : i32
    %75 = vector.broadcast %c-1_i32 : i32 to vector<16x1xi32>
    %76 = arith.addi %32, %75 : vector<16x1xi32>
    %c0_i32_28 = arith.constant 0 : i32
    %77 = vector.broadcast %c0_i32_28 : i32 to vector<16x1xi32>
    %78 = arith.cmpi sge, %76, %77 : vector<16x1xi32>
    %c-1_i32_29 = arith.constant -1 : i32
    %79 = vector.broadcast %c-1_i32_29 : i32 to vector<16x1xi32>
    %80 = arith.addi %32, %79 : vector<16x1xi32>
    %c16_i32_30 = arith.constant 16 : i32
    %81 = vector.broadcast %c16_i32_30 : i32 to vector<16x1xi32>
    %82 = arith.cmpi slt, %80, %81 : vector<16x1xi32>
    %83 = arith.andi %78, %82 : vector<16x1xi1>
    %cst_31 = arith.constant 0.000000e+00 : f32
    %84 = vector.shape_cast %83 : vector<16x1xi1> to vector<16x1xi1>
    %85 = vector.broadcast %84 : vector<16x1xi1> to vector<16x64xi1>
    %86 = vector.broadcast %cst_31 : f32 to vector<16x64xf32>
    %87 = arith.select %85, %74, %86 : vector<16x64xi1>, vector<16x64xf32>
    %88 = arith.truncf %87 : vector<16x64xf32> to vector<16x64xbf16>
    %c2 = arith.constant 2 : index
    %c0_32 = arith.constant 0 : index
    %c0_33 = arith.constant 0 : index
    %89 = vector.load %arg3[%c2, %c0_32, %c0_33] : memref<7x64x64xbf16, #tpu.memory_space<vmem>>, vector<1x64x64xbf16>
    %90 = vector.shape_cast %89 : vector<1x64x64xbf16> to vector<64x64xbf16>
    %cst_34 = arith.constant dense<0.000000e+00> : vector<16x64xf32>
    %91 = tpu.matmul %88, %90, %cst_34 {dimension_numbers = #tpu.dot_dimension_numbers<[1], [0], [0], [1], [0, 0, 1, 1], [], []>} : vector<16x64xbf16>, vector<64x64xbf16>, vector<16x64xf32> -> vector<16x64xf32>
    %92 = arith.addf %73, %91 : vector<16x64xf32>
    %c0_i32_35 = arith.constant 0 : i32
    %93 = vector.broadcast %c0_i32_35 : i32 to vector<16x1xi32>
    %94 = arith.addi %32, %93 : vector<16x1xi32>
    %c0_i32_36 = arith.constant 0 : i32
    %95 = vector.broadcast %c0_i32_36 : i32 to vector<16x1xi32>
    %96 = arith.cmpi sge, %94, %95 : vector<16x1xi32>
    %c0_i32_37 = arith.constant 0 : i32
    %97 = vector.broadcast %c0_i32_37 : i32 to vector<16x1xi32>
    %98 = arith.addi %32, %97 : vector<16x1xi32>
    %c16_i32_38 = arith.constant 16 : i32
    %99 = vector.broadcast %c16_i32_38 : i32 to vector<16x1xi32>
    %100 = arith.cmpi slt, %98, %99 : vector<16x1xi32>
    %101 = arith.andi %96, %100 : vector<16x1xi1>
    %cst_39 = arith.constant 0.000000e+00 : f32
    %102 = vector.shape_cast %101 : vector<16x1xi1> to vector<16x1xi1>
    %103 = vector.broadcast %102 : vector<16x1xi1> to vector<16x64xi1>
    %104 = vector.broadcast %cst_39 : f32 to vector<16x64xf32>
    %105 = arith.select %103, %15, %104 : vector<16x64xi1>, vector<16x64xf32>
    %106 = arith.truncf %105 : vector<16x64xf32> to vector<16x64xbf16>
    %c3 = arith.constant 3 : index
    %c0_40 = arith.constant 0 : index
    %c0_41 = arith.constant 0 : index
    %107 = vector.load %arg3[%c3, %c0_40, %c0_41] : memref<7x64x64xbf16, #tpu.memory_space<vmem>>, vector<1x64x64xbf16>
    %108 = vector.shape_cast %107 : vector<1x64x64xbf16> to vector<64x64xbf16>
    %cst_42 = arith.constant dense<0.000000e+00> : vector<16x64xf32>
    %109 = tpu.matmul %106, %108, %cst_42 {dimension_numbers = #tpu.dot_dimension_numbers<[1], [0], [0], [1], [0, 0, 1, 1], [], []>} : vector<16x64xbf16>, vector<64x64xbf16>, vector<16x64xf32> -> vector<16x64xf32>
    %110 = arith.addf %92, %109 : vector<16x64xf32>
    %c15_i32 = arith.constant 15 : i32
    %111 = tpu.dynamic_rotate %15 by %c15_i32 dim 0 : vector<16x64xf32>, i32 -> vector<16x64xf32>
    %c1_i32_43 = arith.constant 1 : i32
    %112 = vector.broadcast %c1_i32_43 : i32 to vector<16x1xi32>
    %113 = arith.addi %32, %112 : vector<16x1xi32>
    %c0_i32_44 = arith.constant 0 : i32
    %114 = vector.broadcast %c0_i32_44 : i32 to vector<16x1xi32>
    %115 = arith.cmpi sge, %113, %114 : vector<16x1xi32>
    %c1_i32_45 = arith.constant 1 : i32
    %116 = vector.broadcast %c1_i32_45 : i32 to vector<16x1xi32>
    %117 = arith.addi %32, %116 : vector<16x1xi32>
    %c16_i32_46 = arith.constant 16 : i32
    %118 = vector.broadcast %c16_i32_46 : i32 to vector<16x1xi32>
    %119 = arith.cmpi slt, %117, %118 : vector<16x1xi32>
    %120 = arith.andi %115, %119 : vector<16x1xi1>
    %cst_47 = arith.constant 0.000000e+00 : f32
    %121 = vector.shape_cast %120 : vector<16x1xi1> to vector<16x1xi1>
    %122 = vector.broadcast %121 : vector<16x1xi1> to vector<16x64xi1>
    %123 = vector.broadcast %cst_47 : f32 to vector<16x64xf32>
    %124 = arith.select %122, %111, %123 : vector<16x64xi1>, vector<16x64xf32>
    %125 = arith.truncf %124 : vector<16x64xf32> to vector<16x64xbf16>
    %c4 = arith.constant 4 : index
    %c0_48 = arith.constant 0 : index
    %c0_49 = arith.constant 0 : index
    %126 = vector.load %arg3[%c4, %c0_48, %c0_49] : memref<7x64x64xbf16, #tpu.memory_space<vmem>>, vector<1x64x64xbf16>
    %127 = vector.shape_cast %126 : vector<1x64x64xbf16> to vector<64x64xbf16>
    %cst_50 = arith.constant dense<0.000000e+00> : vector<16x64xf32>
    %128 = tpu.matmul %125, %127, %cst_50 {dimension_numbers = #tpu.dot_dimension_numbers<[1], [0], [0], [1], [0, 0, 1, 1], [], []>} : vector<16x64xbf16>, vector<64x64xbf16>, vector<16x64xf32> -> vector<16x64xf32>
    %129 = arith.addf %110, %128 : vector<16x64xf32>
    %c14_i32 = arith.constant 14 : i32
    %130 = tpu.dynamic_rotate %15 by %c14_i32 dim 0 : vector<16x64xf32>, i32 -> vector<16x64xf32>
    %c2_i32_51 = arith.constant 2 : i32
    %131 = vector.broadcast %c2_i32_51 : i32 to vector<16x1xi32>
    %132 = arith.addi %32, %131 : vector<16x1xi32>
    %c0_i32_52 = arith.constant 0 : i32
    %133 = vector.broadcast %c0_i32_52 : i32 to vector<16x1xi32>
    %134 = arith.cmpi sge, %132, %133 : vector<16x1xi32>
    %c2_i32_53 = arith.constant 2 : i32
    %135 = vector.broadcast %c2_i32_53 : i32 to vector<16x1xi32>
    %136 = arith.addi %32, %135 : vector<16x1xi32>
    %c16_i32_54 = arith.constant 16 : i32
    %137 = vector.broadcast %c16_i32_54 : i32 to vector<16x1xi32>
    %138 = arith.cmpi slt, %136, %137 : vector<16x1xi32>
    %139 = arith.andi %134, %138 : vector<16x1xi1>
    %cst_55 = arith.constant 0.000000e+00 : f32
    %140 = vector.shape_cast %139 : vector<16x1xi1> to vector<16x1xi1>
    %141 = vector.broadcast %140 : vector<16x1xi1> to vector<16x64xi1>
    %142 = vector.broadcast %cst_55 : f32 to vector<16x64xf32>
    %143 = arith.select %141, %130, %142 : vector<16x64xi1>, vector<16x64xf32>
    %144 = arith.truncf %143 : vector<16x64xf32> to vector<16x64xbf16>
    %c5 = arith.constant 5 : index
    %c0_56 = arith.constant 0 : index
    %c0_57 = arith.constant 0 : index
    %145 = vector.load %arg3[%c5, %c0_56, %c0_57] : memref<7x64x64xbf16, #tpu.memory_space<vmem>>, vector<1x64x64xbf16>
    %146 = vector.shape_cast %145 : vector<1x64x64xbf16> to vector<64x64xbf16>
    %cst_58 = arith.constant dense<0.000000e+00> : vector<16x64xf32>
    %147 = tpu.matmul %144, %146, %cst_58 {dimension_numbers = #tpu.dot_dimension_numbers<[1], [0], [0], [1], [0, 0, 1, 1], [], []>} : vector<16x64xbf16>, vector<64x64xbf16>, vector<16x64xf32> -> vector<16x64xf32>
    %148 = arith.addf %129, %147 : vector<16x64xf32>
    %c13_i32 = arith.constant 13 : i32
    %149 = tpu.dynamic_rotate %15 by %c13_i32 dim 0 : vector<16x64xf32>, i32 -> vector<16x64xf32>
    %c3_i32_59 = arith.constant 3 : i32
    %150 = vector.broadcast %c3_i32_59 : i32 to vector<16x1xi32>
    %151 = arith.addi %32, %150 : vector<16x1xi32>
    %c0_i32_60 = arith.constant 0 : i32
    %152 = vector.broadcast %c0_i32_60 : i32 to vector<16x1xi32>
    %153 = arith.cmpi sge, %151, %152 : vector<16x1xi32>
    %c3_i32_61 = arith.constant 3 : i32
    %154 = vector.broadcast %c3_i32_61 : i32 to vector<16x1xi32>
    %155 = arith.addi %32, %154 : vector<16x1xi32>
    %c16_i32_62 = arith.constant 16 : i32
    %156 = vector.broadcast %c16_i32_62 : i32 to vector<16x1xi32>
    %157 = arith.cmpi slt, %155, %156 : vector<16x1xi32>
    %158 = arith.andi %153, %157 : vector<16x1xi1>
    %cst_63 = arith.constant 0.000000e+00 : f32
    %159 = vector.shape_cast %158 : vector<16x1xi1> to vector<16x1xi1>
    %160 = vector.broadcast %159 : vector<16x1xi1> to vector<16x64xi1>
    %161 = vector.broadcast %cst_63 : f32 to vector<16x64xf32>
    %162 = arith.select %160, %149, %161 : vector<16x64xi1>, vector<16x64xf32>
    %163 = arith.truncf %162 : vector<16x64xf32> to vector<16x64xbf16>
    %c6 = arith.constant 6 : index
    %c0_64 = arith.constant 0 : index
    %c0_65 = arith.constant 0 : index
    %164 = vector.load %arg3[%c6, %c0_64, %c0_65] : memref<7x64x64xbf16, #tpu.memory_space<vmem>>, vector<1x64x64xbf16>
    %165 = vector.shape_cast %164 : vector<1x64x64xbf16> to vector<64x64xbf16>
    %cst_66 = arith.constant dense<0.000000e+00> : vector<16x64xf32>
    %166 = tpu.matmul %163, %165, %cst_66 {dimension_numbers = #tpu.dot_dimension_numbers<[1], [0], [0], [1], [0, 0, 1, 1], [], []>} : vector<16x64xbf16>, vector<64x64xbf16>, vector<16x64xf32> -> vector<16x64xf32>
    %167 = arith.addf %148, %166 : vector<16x64xf32>
    %cst_67 = arith.constant 0.000000e+00 : f32
    %168 = vector.broadcast %cst_67 : f32 to vector<16x64xf32>
    %169 = arith.subf %168, %167 : vector<16x64xf32>
    %170 = math.exp %169 : vector<16x64xf32>
    %cst_68 = arith.constant 1.000000e+00 : f32
    %171 = vector.broadcast %cst_68 : f32 to vector<16x64xf32>
    %172 = arith.addf %171, %170 : vector<16x64xf32>
    %173 = tpu.reciprocal %172 {approx = true} : vector<16x64xf32> -> vector<16x64xf32>
    %174 = arith.mulf %167, %173 : vector<16x64xf32>
    %175 = vector.extract_strided_slice %2 {offsets = [0, 0], sizes = [16, 64], strides = [1, 1]} : vector<16x192xf32> to vector<16x64xf32>
    %176 = arith.truncf %175 : vector<16x64xf32> to vector<16x64xbf16>
    %c0_69 = arith.constant 0 : index
    %c0_70 = arith.constant 0 : index
    %177 = vector.load %arg6[%c0_69, %c0_70] : memref<16x64xbf16, #tpu.memory_space<vmem>>, vector<16x64xbf16>
    tpu.vector_store %arg6[%c0_69, %c0_70], %176 {strides = array<i32>} : memref<16x64xbf16, #tpu.memory_space<vmem>>, vector<16x64xbf16>,
    %178 = arith.truncf %174 : vector<16x64xf32> to vector<16x64xbf16>
    %c0_71 = arith.constant 0 : index
    %c0_72 = arith.constant 0 : index
    %179 = vector.load %arg7[%c0_71, %c0_72] : memref<16x64xbf16, #tpu.memory_space<vmem>>, vector<16x64xbf16>
    tpu.vector_store %arg7[%c0_71, %c0_72], %178 {strides = array<i32>} : memref<16x64xbf16, #tpu.memory_space<vmem>>, vector<16x64xbf16>,
    %180 = vector.extract_strided_slice %2 {offsets = [0, 64], sizes = [16, 16], strides = [1, 1]} : vector<16x192xf32> to vector<16x16xf32>
    %181 = arith.truncf %180 : vector<16x16xf32> to vector<16x16xbf16>
    %c0_73 = arith.constant 0 : index
    %c0_74 = arith.constant 0 : index
    %182 = vector.load %arg8[%c0_73, %c0_74] : memref<16x16xbf16, #tpu.memory_space<vmem>>, vector<16x16xbf16>
    tpu.vector_store %arg8[%c0_73, %c0_74], %181 {strides = array<i32>} : memref<16x16xbf16, #tpu.memory_space<vmem>>, vector<16x16xbf16>,
    %183 = vector.extract_strided_slice %2 {offsets = [0, 80], sizes = [16, 16], strides = [1, 1]} : vector<16x192xf32> to vector<16x16xf32>
    %184 = arith.truncf %183 : vector<16x16xf32> to vector<16x16xbf16>
    %c0_75 = arith.constant 0 : index
    %c0_76 = arith.constant 0 : index
    %185 = vector.load %arg9[%c0_75, %c0_76] : memref<16x16xbf16, #tpu.memory_space<vmem>>, vector<16x16xbf16>
    tpu.vector_store %arg9[%c0_75, %c0_76], %184 {strides = array<i32>} : memref<16x16xbf16, #tpu.memory_space<vmem>>, vector<16x16xbf16>,
    %c0_77 = arith.constant 0 : index
    %c0_78 = arith.constant 0 : index
    %186 = vector.load %arg10[%c0_77, %c0_78] : memref<16x8xf32, #tpu.memory_space<vmem>>, vector<16x8xf32>
    tpu.vector_store %arg10[%c0_77, %c0_78], %14 {strides = array<i32>} : memref<16x8xf32, #tpu.memory_space<vmem>>, vector<16x8xf32>,
    return
  }
  func.func @transform_0(%arg0: i32) -> (i32, i32) {
    %c0_i32 = arith.constant 0 : i32
    %c0_i32_0 = arith.constant 0 : i32
    return %arg0, %c0_i32 : i32, i32
  }
  func.func @transform_1(%arg0: i32) -> (i32, i32) {
    %c0_i32 = arith.constant 0 : i32
    %c0_i32_0 = arith.constant 0 : i32
    %c0_i32_1 = arith.constant 0 : i32
    return %c0_i32, %c0_i32_0 : i32, i32
  }
  func.func @transform_2(%arg0: i32) -> (i32, i32, i32) {
    %c0_i32 = arith.constant 0 : i32
    %c0_i32_0 = arith.constant 0 : i32
    %c0_i32_1 = arith.constant 0 : i32
    %c0_i32_2 = arith.constant 0 : i32
    return %c0_i32, %c0_i32_0, %c0_i32_1 : i32, i32, i32
  }
  func.func @transform_3(%arg0: i32) -> (i32, i32) {
    %c0_i32 = arith.constant 0 : i32
    %c0_i32_0 = arith.constant 0 : i32
    %c0_i32_1 = arith.constant 0 : i32
    return %c0_i32, %c0_i32_0 : i32, i32
  }
  func.func @transform_4(%arg0: i32) -> (i32, i32) {
    %c0_i32 = arith.constant 0 : i32
    %c0_i32_0 = arith.constant 0 : i32
    %c0_i32_1 = arith.constant 0 : i32
    return %c0_i32, %c0_i32_0 : i32, i32
  }
  func.func @transform_5(%arg0: i32) -> (i32, i32) {
    %c0_i32 = arith.constant 0 : i32
    %c0_i32_0 = arith.constant 0 : i32
    return %arg0, %c0_i32 : i32, i32
  }
  func.func @transform_6(%arg0: i32) -> (i32, i32) {
    %c0_i32 = arith.constant 0 : i32
    %c0_i32_0 = arith.constant 0 : i32
    return %arg0, %c0_i32 : i32, i32
  }
  func.func @transform_7(%arg0: i32) -> (i32, i32) {
    %c0_i32 = arith.constant 0 : i32
    %c0_i32_0 = arith.constant 0 : i32
    return %arg0, %c0_i32 : i32, i32
  }
  func.func @transform_8(%arg0: i32) -> (i32, i32) {
    %c0_i32 = arith.constant 0 : i32
    %c0_i32_0 = arith.constant 0 : i32
    return %arg0, %c0_i32 : i32, i32
  }
  func.func @transform_9(%arg0: i32) -> (i32, i32) {
    %c0_i32 = arith.constant 0 : i32
    %c0_i32_0 = arith.constant 0 : i32
    return %arg0, %c0_i32 : i32, i32
  }
}

</mosaic_0001>

<llo_original>
// kernel: tpu_custom_call.1
$region0: #{tpu_custom_call.1}
  #allocation0 [shape = 'u32[]', space=smem, size = 0x4, offset = 0x4, fixed_abs, tag = 'smem constant byte address 0x4 - core index']
  #allocation1 [shape = 'u32[144,128]{1,0:T(1,128)}', space=vmem, size = 0x12000, scoped, tag = 'internal scratch']
  %s0 = inlined_call_operand.hbm [shape: bf16[32,32], index: 0, kind: input, shape index: {}]
  %s1 = inlined_call_operand.hbm [shape: bf16[32,192], index: 1, kind: input, shape index: {}]
  %s2 = inlined_call_operand.hbm [shape: bf16[7,64,64], index: 2, kind: input, shape index: {}]
  %s3 = inlined_call_operand.vmem [shape: f32[1,64], index: 3, kind: input, shape index: {}]
  %s4 = inlined_call_operand.vmem [shape: f32[1,8], index: 4, kind: input, shape index: {}]
  %s5 = inlined_call_operand.hbm [shape: bf16[32,64], index: 5, kind: output, shape index: {0}]
  %s6 = inlined_call_operand.hbm [shape: bf16[32,64], index: 6, kind: output, shape index: {1}]
  %s7 = inlined_call_operand.vmem [shape: bf16[32,16], index: 7, kind: output, shape index: {2}]
  %s8 = inlined_call_operand.vmem [shape: bf16[32,16], index: 8, kind: output, shape index: {3}]
  %s9 = inlined_call_operand.vmem [shape: f32[32,8], index: 9, kind: output, shape index: {4}]
  %10 = xla_tuple %s5, %s6, %s7, %s8, %s9
  %s11 = sld [smem:[#allocation0]]
  $region97: #{tpu_custom_call.1} parent=0
    _
  %s13 = ssub.s32 1, %s11
  %s14 = scalar_select 0, %s13, %s11
  $region1: #{tpu_custom_call.1} parent=0
    #allocation2 [shape = 'u8[8192]{0}', space=vmem, size = 0x2000, scoped, tag = 'input window, operand 0']
    #allocation3 [shape = 's32[2]{0}', space=sflag, size = 0x8, scoped, tag = 'scoped memory for tpu_custom_call.1']
    #allocation4 [shape = 's32[2]{0}', space=sflag, size = 0x8, scoped, tag = 'scoped memory for tpu_custom_call.1']
    #allocation5 [shape = 'u8[16384]{0}', space=vmem, size = 0x4000, scoped, tag = 'input window, operand 1, single buffered']
    #allocation6 [shape = 's32[1]{0}', space=sflag, size = 0x4, scoped, tag = 'scoped memory for tpu_custom_call.1']
    #allocation7 [shape = 'u8[114688]{0}', space=vmem, size = 0x1c000, scoped, tag = 'input window, operand 2, single buffered']
    #allocation8 [shape = 'u8[8192]{0}', space=vmem, size = 0x2000, scoped, tag = 'output window, operand 0']
    #allocation9 [shape = 'u8[8192]{0}', space=vmem, size = 0x2000, scoped, tag = 'output window, operand 1']
    #allocation10 [shape = 's32[2]{0}', space=sflag, size = 0x8, scoped, tag = 'scoped memory for tpu_custom_call.1']
    %15 = vsyncpa [#allocation3], 0
    %s16 = scalar_lea.sflag [#allocation3], 1
    %17 = vsyncpa %s16, 0
    %18 = vsyncpa [#allocation6], 0
    %19 = vsyncpa [#allocation4], 0
    %s20 = scalar_lea.sflag [#allocation4], 1
    %21 = vsyncpa %s20, 0
    %22 = vsyncpa [#allocation10], 0
    %s23 = scalar_lea.sflag [#allocation10], 1
    %24 = vsyncpa %s23, 0
    loop: start=0, step=1, limit=4
    $region2: #{tpu_custom_call.1} parent=1 // loop_pre_header
      _
    $region3: #{tpu_custom_call.1} parent=1 // loop_header
      %s26 = sphi 0, %s30
      %p27 = scmp.ge.s32.totalorder %s26, 4
      %s36 = sphi 0, %s38
      %s39 = sphi 0, %s36
      %s40 = sphi 0, %s39
      %s56 = sphi 0, %s40
      %s60 = sphi 0, %s60
      %s62 = sphi 0, %s60
      %s63 = sphi 0, %s62
      %s77 = sphi 0, %s63
      %s81 = sphi 0, %s81
      %s83 = sphi 0, %s81
      %s84 = sphi 0, %s83
      %s98 = sphi 0, %s84
      %s102 = sphi 0, %s102
      %s104 = sphi 0, %s102
      %s105 = sphi 0, %s104
      %s119 = sphi 0, %s105
      %s123 = sphi 0, %s123
      %s125 = sphi 0, %s123
      %s126 = sphi 0, %s125
      %s140 = sphi 0, %s126
      %s146 = sphi 0, %s148
      %s149 = sphi 0, %s146
      %s150 = sphi 0, %s149
      %s166 = sphi 0, %s150
      %s172 = sphi 0, %s174
      %s175 = sphi 0, %s172
      %s176 = sphi 0, %s175
      %s192 = sphi 0, %s176
      %s198 = sphi 0, %s200
      %s201 = sphi 0, %s198
      %s202 = sphi 0, %s201
      %s218 = sphi 0, %s202
      %s224 = sphi 0, %s226
      %s227 = sphi 0, %s224
      %s228 = sphi 0, %s227
      %s244 = sphi 0, %s228
      %s250 = sphi 0, %s252
      %s253 = sphi 0, %s250
      %s254 = sphi 0, %s253
      %s270 = sphi 0, %s254
    $region4: #{tpu_custom_call.1} parent=1 // loop_header_branch
      %29 = sbr.rel (%p27) target = $region8
    $region5: #{tpu_custom_call.1} parent=1 // loop_body
      %s31 = ssub.s32 %s26, 1
      %s32 = ssub.s32 %s26, 2
      %s33 = sadd.s32 %s26, 1
      %s34 = ssub.s32 %s26, %s33
      %p35 = scmp.eq.s32.totalorder %s34, 0
      %s37 = sadd.s32 %s36, 1
      %s38 = scalar_select %p35, %s36, %s37
      %p41 = pneg %p35
      %p42 = scmp.eq.s32.totalorder %s26, 1
      %p43 = por %p41, %p42
      %p44 = scmp.ne.s32.totalorder %s36, %s39
      %p45 = scmp.eq.s32.totalorder %s26, 0
      %p46 = por %p44, %p45
      %p47 = scmp.ne.s32.totalorder %s36, %s39
      %p48 = scmp.eq.s32.totalorder %s31, 1
      %p49 = por %p47, %p48
      %p50 = scmp.ne.s32.totalorder %s39, %s40
      %p51 = scmp.eq.s32.totalorder %s31, 0
      %p52 = por %p50, %p51
      %p53 = scmp.ne.s32.totalorder %s39, %s40
      %p54 = scmp.eq.s32.totalorder %s32, 1
      %p55 = por %p53, %p54
      %p57 = scmp.ne.s32.totalorder %s40, %s56
      %p58 = scmp.eq.s32.totalorder %s32, 0
      %p59 = por %p57, %p58
      %s61 = sadd.s32 %s60, 1
      %p64 = scmp.eq.s32.totalorder %s26, 1
      %p65 = scmp.ne.s32.totalorder %s60, %s62
      %p66 = scmp.eq.s32.totalorder %s26, 0
      %p67 = por %p65, %p66
      %p68 = scmp.ne.s32.totalorder %s60, %s62
      %p69 = scmp.eq.s32.totalorder %s31, 1
      %p70 = por %p68, %p69
      %p71 = scmp.ne.s32.totalorder %s62, %s63
      %p72 = scmp.eq.s32.totalorder %s31, 0
      %p73 = por %p71, %p72
      %p74 = scmp.ne.s32.totalorder %s62, %s63
      %p75 = scmp.eq.s32.totalorder %s32, 1
      %p76 = por %p74, %p75
      %p78 = scmp.ne.s32.totalorder %s63, %s77
      %p79 = scmp.eq.s32.totalorder %s32, 0
      %p80 = por %p78, %p79
      %s82 = sadd.s32 %s81, 1
      %p85 = scmp.eq.s32.totalorder %s26, 1
      %p86 = scmp.ne.s32.totalorder %s81, %s83
      %p87 = scmp.eq.s32.totalorder %s26, 0
      %p88 = por %p86, %p87
      %p89 = scmp.ne.s32.totalorder %s81, %s83
      %p90 = scmp.eq.s32.totalorder %s31, 1
      %p91 = por %p89, %p90
      %p92 = scmp.ne.s32.totalorder %s83, %s84
      %p93 = scmp.eq.s32.totalorder %s31, 0
      %p94 = por %p92, %p93
      %p95 = scmp.ne.s32.totalorder %s83, %s84
      %p96 = scmp.eq.s32.totalorder %s32, 1
      %p97 = por %p95, %p96
      %p99 = scmp.ne.s32.totalorder %s84, %s98
      %p100 = scmp.eq.s32.totalorder %s32, 0
      %p101 = por %p99, %p100
      %s103 = sadd.s32 %s102, 1
      %p106 = scmp.eq.s32.totalorder %s26, 1
      %p107 = scmp.ne.s32.totalorder %s102, %s104
      %p108 = scmp.eq.s32.totalorder %s26, 0
      %p109 = por %p107, %p108
      %p110 = scmp.ne.s32.totalorder %s102, %s104
      %p111 = scmp.eq.s32.totalorder %s31, 1
      %p112 = por %p110, %p111
      %p113 = scmp.ne.s32.totalorder %s104, %s105
      %p114 = scmp.eq.s32.totalorder %s31, 0
      %p115 = por %p113, %p114
      %p116 = scmp.ne.s32.totalorder %s104, %s105
      %p117 = scmp.eq.s32.totalorder %s32, 1
      %p118 = por %p116, %p117
      %p120 = scmp.ne.s32.totalorder %s105, %s119
      %p121 = scmp.eq.s32.totalorder %s32, 0
      %p122 = por %p120, %p121
      %s124 = sadd.s32 %s123, 1
      %p127 = scmp.eq.s32.totalorder %s26, 1
      %p128 = scmp.ne.s32.totalorder %s123, %s125
      %p129 = scmp.eq.s32.totalorder %s26, 0
      %p130 = por %p128, %p129
      %p131 = scmp.ne.s32.totalorder %s123, %s125
      %p132 = scmp.eq.s32.totalorder %s31, 1
      %p133 = por %p131, %p132
      %p134 = scmp.ne.s32.totalorder %s125, %s126
      %p135 = scmp.eq.s32.totalorder %s31, 0
      %p136 = por %p134, %p135
      %p137 = scmp.ne.s32.totalorder %s125, %s126
      %p138 = scmp.eq.s32.totalorder %s32, 1
      %p139 = por %p137, %p138
      %p141 = scmp.ne.s32.totalorder %s126, %s140
      %p142 = scmp.eq.s32.totalorder %s32, 0
      %p143 = por %p141, %p142
      %s144 = ssub.s32 %s26, %s33
      %p145 = scmp.eq.s32.totalorder %s144, 0
      %s147 = sadd.s32 %s146, 1
      %s148 = scalar_select %p145, %s146, %s147
      %p151 = pneg %p145
      %p152 = scmp.eq.s32.totalorder %s26, 1
      %p153 = por %p151, %p152
      %p154 = scmp.ne.s32.totalorder %s146, %s149
      %p155 = scmp.eq.s32.totalorder %s26, 0
      %p156 = por %p154, %p155
      %p157 = scmp.ne.s32.totalorder %s146, %s149
      %p158 = scmp.eq.s32.totalorder %s31, 1
      %p159 = por %p157, %p158
      %p160 = scmp.ne.s32.totalorder %s149, %s150
      %p161 = scmp.eq.s32.totalorder %s31, 0
      %p162 = por %p160, %p161
      %p163 = scmp.ne.s32.totalorder %s149, %s150
      %p164 = scmp.eq.s32.totalorder %s32, 1
      %p165 = por %p163, %p164
      %p167 = scmp.ne.s32.totalorder %s150, %s166
      %p168 = scmp.eq.s32.totalorder %s32, 0
      %p169 = por %p167, %p168
      %s170 = ssub.s32 %s26, %s33
      %p171 = scmp.eq.s32.totalorder %s170, 0
      %s173 = sadd.s32 %s172, 1
      %s174 = scalar_select %p171, %s172, %s173
      %p177 = pneg %p171
      %p178 = scmp.eq.s32.totalorder %s26, 1
      %p179 = por %p177, %p178
      %p180 = scmp.ne.s32.totalorder %s172, %s175
      %p181 = scmp.eq.s32.totalorder %s26, 0
      %p182 = por %p180, %p181
      %p183 = scmp.ne.s32.totalorder %s172, %s175
      %p184 = scmp.eq.s32.totalorder %s31, 1
      %p185 = por %p183, %p184
      %p186 = scmp.ne.s32.totalorder %s175, %s176
      %p187 = scmp.eq.s32.totalorder %s31, 0
      %p188 = por %p186, %p187
      %p189 = scmp.ne.s32.totalorder %s175, %s176
      %p190 = scmp.eq.s32.totalorder %s32, 1
      %p191 = por %p189, %p190
      %p193 = scmp.ne.s32.totalorder %s176, %s192
      %p194 = scmp.eq.s32.totalorder %s32, 0
      %p195 = por %p193, %p194
      %s196 = ssub.s32 %s26, %s33
      %p197 = scmp.eq.s32.totalorder %s196, 0
      %s199 = sadd.s32 %s198, 1
      %s200 = scalar_select %p197, %s198, %s199
      %p203 = pneg %p197
      %p204 = scmp.eq.s32.totalorder %s26, 1
      %p205 = por %p203, %p204
      %p206 = scmp.ne.s32.totalorder %s198, %s201
      %p207 = scmp.eq.s32.totalorder %s26, 0
      %p208 = por %p206, %p207
      %p209 = scmp.ne.s32.totalorder %s198, %s201
      %p210 = scmp.eq.s32.totalorder %s31, 1
      %p211 = por %p209, %p210
      %p212 = scmp.ne.s32.totalorder %s201, %s202
      %p213 = scmp.eq.s32.totalorder %s31, 0
      %p214 = por %p212, %p213
      %p215 = scmp.ne.s32.totalorder %s201, %s202
      %p216 = scmp.eq.s32.totalorder %s32, 1
      %p217 = por %p215, %p216
      %p219 = scmp.ne.s32.totalorder %s202, %s218
      %p220 = scmp.eq.s32.totalorder %s32, 0
      %p221 = por %p219, %p220
      %s222 = ssub.s32 %s26, %s33
      %p223 = scmp.eq.s32.totalorder %s222, 0
      %s225 = sadd.s32 %s224, 1
      %s226 = scalar_select %p223, %s224, %s225
      %p229 = pneg %p223
      %p230 = scmp.eq.s32.totalorder %s26, 1
      %p231 = por %p229, %p230
      %p232 = scmp.ne.s32.totalorder %s224, %s227
      %p233 = scmp.eq.s32.totalorder %s26, 0
      %p234 = por %p232, %p233
      %p235 = scmp.ne.s32.totalorder %s224, %s227
      %p236 = scmp.eq.s32.totalorder %s31, 1
      %p237 = por %p235, %p236
      %p238 = scmp.ne.s32.totalorder %s227, %s228
      %p239 = scmp.eq.s32.totalorder %s31, 0
      %p240 = por %p238, %p239
      %p241 = scmp.ne.s32.totalorder %s227, %s228
      %p242 = scmp.eq.s32.totalorder %s32, 1
      %p243 = por %p241, %p242
      %p245 = scmp.ne.s32.totalorder %s228, %s244
      %p246 = scmp.eq.s32.totalorder %s32, 0
      %p247 = por %p245, %p246
      %s248 = ssub.s32 %s26, %s33
      %p249 = scmp.eq.s32.totalorder %s248, 0
      %s251 = sadd.s32 %s250, 1
      %s252 = scalar_select %p249, %s250, %s251
      %p255 = pneg %p249
      %p256 = scmp.eq.s32.totalorder %s26, 1
      %p257 = por %p255, %p256
      %p258 = scmp.ne.s32.totalorder %s250, %s253
      %p259 = scmp.eq.s32.totalorder %s26, 0
      %p260 = por %p258, %p259
      %p261 = scmp.ne.s32.totalorder %s250, %s253
      %p262 = scmp.eq.s32.totalorder %s31, 1
      %p263 = por %p261, %p262
      %p264 = scmp.ne.s32.totalorder %s253, %s254
      %p265 = scmp.eq.s32.totalorder %s31, 0
      %p266 = por %p264, %p265
      %p267 = scmp.ne.s32.totalorder %s253, %s254
      %p268 = scmp.eq.s32.totalorder %s32, 1
      %p269 = por %p267, %p268
      %p271 = scmp.ne.s32.totalorder %s254, %s270
      %p272 = scmp.eq.s32.totalorder %s32, 0
      %p273 = por %p271, %p272
      %p274 = scmp.le.s32.totalorder 1, %s26
      %p275 = scmp.lt.s32.totalorder %s26, 3
      %p276 = pnand %p274, %p275
      %p277 = pneg %p276
      // Predicated region
      $region9: #{tpu_custom_call.1} parent=5 // pred_check
        _
      $region10: #{tpu_custom_call.1} parent=5 // pred_check_branch
        %279 = sbr.rel (%p276) target = $region12
      $region11: #{tpu_custom_call.1} parent=5 // pred_region
        %s280 = ssub.s32 %s26, 1
        // Predicated region
        $region13: #{tpu_custom_call.1} parent=11 // pred_check
          %p281 = pneg %p73
        $region14: #{tpu_custom_call.1} parent=11 // pred_check_branch
          %283 = sbr.rel (%p281) target = $region16
        $region15: #{tpu_custom_call.1} parent=11 // pred_region
          %s285 = ssub.s32 512, 512
          %286 = vsyncadd [#allocation6], %s285
          %s287 = sshll.u32 [#allocation5], 4
          %s288 = int_to_ptr.vmem [resolvable:$true] %s287
          %293 = dma.hbm_to_vmem [thread:$0]  %s1, 512, %s288, [#allocation6], 128, 128, 8
        $region16: #{tpu_custom_call.1} parent=11 // pred_fallthru
          _
        // Predicated region
        $region17: #{tpu_custom_call.1} parent=11 // pred_check
          %p294 = pneg %p94
        $region18: #{tpu_custom_call.1} parent=11 // pred_check_branch
          %296 = sbr.rel (%p294) target = $region20
        $region19: #{tpu_custom_call.1} parent=11 // pred_region
          %s298 = ssub.s32 3584, 3584
          %299 = vsyncadd [#allocation6], %s298
          %s300 = sshll.u32 [#allocation7], 4
          %s301 = int_to_ptr.vmem [resolvable:$true] %s300
          %306 = dma.hbm_to_vmem [thread:$0]  %s2, 3584, %s301, [#allocation6], 64, 64, 4
        $region20: #{tpu_custom_call.1} parent=11 // pred_fallthru
          _
        // Predicated region
        $region21: #{tpu_custom_call.1} parent=11 // pred_check
          %p307 = pneg %p115
        $region22: #{tpu_custom_call.1} parent=11 // pred_check_branch
          %309 = sbr.rel (%p307) target = $region24
        $region23: #{tpu_custom_call.1} parent=11 // pred_region
          _
        $region24: #{tpu_custom_call.1} parent=11 // pred_fallthru
          _
        // Predicated region
        $region25: #{tpu_custom_call.1} parent=11 // pred_check
          %p310 = pneg %p136
        $region26: #{tpu_custom_call.1} parent=11 // pred_check_branch
          %312 = sbr.rel (%p310) target = $region28
        $region27: #{tpu_custom_call.1} parent=11 // pred_region
          _
        $region28: #{tpu_custom_call.1} parent=11 // pred_fallthru
          _
      $region12: #{tpu_custom_call.1} parent=5 // pred_fallthru
        _
      %p313 = scmp.lt.s32.totalorder %s26, 2
      // Predicated region
      $region29: #{tpu_custom_call.1} parent=5 // pred_check
        %p314 = pneg %p313
      $region30: #{tpu_custom_call.1} parent=5 // pred_check_branch
        %316 = sbr.rel (%p314) target = $region32
      $region31: #{tpu_custom_call.1} parent=5 // pred_region
        // Predicated region
        $region33: #{tpu_custom_call.1} parent=31 // pred_check
          %p317 = pneg %p46
        $region34: #{tpu_custom_call.1} parent=31 // pred_check_branch
          %319 = sbr.rel (%p317) target = $region36
        $region35: #{tpu_custom_call.1} parent=31 // pred_region
          %s320 = sand.u32 %s36, 1
          %s321 = scalar_lea.sflag [#allocation3], %s320
          %s322 = sand.u32 %s36, 1
          %s323 = smul.addr %s322, 8
          %s324 = scalar_lea.vmem [#allocation2], %s323
          %s325 = smul.u32 2, %s26
          %s327 = ssub.s32 128, 128
          %328 = vsyncadd %s321, %s327
          %s329 = smul.addr %s325, 64
          %s330 = scalar_lea.hbm %s0, %s329
          %s331 = sshll.u32 %s324, 4
          %s332 = int_to_ptr.vmem [resolvable:$true] %s331
          %337 = dma.hbm_to_vmem [thread:$0]  %s330, 128, %s332, %s321, 64, 64, 4
        $region36: #{tpu_custom_call.1} parent=31 // pred_fallthru
          _
      $region32: #{tpu_custom_call.1} parent=5 // pred_fallthru
        _
      %p338 = scmp.le.s32.totalorder 1, %s26
      %p339 = scmp.lt.s32.totalorder %s26, 3
      %p340 = pnand %p338, %p339
      %p341 = pneg %p340
      // Predicated region
      $region37: #{tpu_custom_call.1} parent=5 // pred_check
        _
      $region38: #{tpu_custom_call.1} parent=5 // pred_check_branch
        %343 = sbr.rel (%p340) target = $region40
      $region39: #{tpu_custom_call.1} parent=5 // pred_region
        %s344 = ssub.s32 %s26, 1
        %s345 = sand.u32 %s39, 1
        %s346 = scalar_lea.sflag [#allocation3], %s345
        %s347 = sand.u32 %s39, 1
        %s348 = smul.addr %s347, 8
        %s349 = scalar_lea.vmem [#allocation2], %s348
        // Predicated region
        $region41: #{tpu_custom_call.1} parent=39 // pred_check
          %p350 = pneg %p52
        $region42: #{tpu_custom_call.1} parent=39 // pred_check_branch
          %352 = sbr.rel (%p350) target = $region44
        $region43: #{tpu_custom_call.1} parent=39 // pred_region
          %353 = dma.done %s346, 128
        $region44: #{tpu_custom_call.1} parent=39 // pred_fallthru
          _
        // Predicated region
        $region45: #{tpu_custom_call.1} parent=39 // pred_check
          %p354 = pneg %p73
        $region46: #{tpu_custom_call.1} parent=39 // pred_check_branch
          %356 = sbr.rel (%p354) target = $region48
        $region47: #{tpu_custom_call.1} parent=39 // pred_region
          %357 = dma.done [#allocation6], 512
        $region48: #{tpu_custom_call.1} parent=39 // pred_fallthru
          _
        // Predicated region
        $region49: #{tpu_custom_call.1} parent=39 // pred_check
          %p358 = pneg %p94
        $region50: #{tpu_custom_call.1} parent=39 // pred_check_branch
          %360 = sbr.rel (%p358) target = $region52
        $region51: #{tpu_custom_call.1} parent=39 // pred_region
          %361 = dma.done [#allocation6], 3584
        $region52: #{tpu_custom_call.1} parent=39 // pred_fallthru
          _
        %s362 = sand.u32 %s39, 1
        %s363 = scalar_lea.sflag [#allocation3], %s362
        %s364 = sand.u32 %s39, 1
        %s365 = smul.addr %s364, 8
        %s366 = scalar_lea.vmem [#allocation2], %s365
        %p367 = pneg %p52
        %p368 = pneg %p49
        %p369 = pneg %p73
        %p370 = pneg %p70
        %p371 = pneg %p94
        %p372 = pneg %p91
        %p373 = pneg %p115
        %p374 = pneg %p112
        %p375 = pneg %p136
        %p376 = pneg %p133
        %p377 = pneg %p162
        %p378 = pneg %p159
        %s379 = sand.u32 %s149, 1
        %s380 = scalar_lea.sflag [#allocation4], %s379
        %s381 = sand.u32 %s149, 1
        %s382 = smul.addr %s381, 8
        %s383 = scalar_lea.vmem [#allocation8], %s382
        %p384 = pneg %p188
        %p385 = pneg %p185
        %s386 = sand.u32 %s175, 1
        %s387 = scalar_lea.sflag [#allocation10], %s386
        %s388 = sand.u32 %s175, 1
        %s389 = smul.addr %s388, 8
        %s390 = scalar_lea.vmem [#allocation9], %s389
        %p391 = pneg %p214
        %p392 = pneg %p211
        %s393 = smul.u32 2, %s31
        %p394 = scmp.lt.s32.totalorder %s393, 3
        %s395 = scalar_select %p394, %s393, 3
        %s396 = smul.addr %s395, 4
        %s397 = scalar_lea.vmem %s7, %s396
        %p398 = pneg %p240
        %p399 = pneg %p237
        %s400 = smul.u32 2, %s31
        %p401 = scmp.lt.s32.totalorder %s400, 3
        %s402 = scalar_select %p401, %s400, 3
        %s403 = smul.addr %s402, 4
        %s404 = scalar_lea.vmem %s8, %s403
        %p405 = pneg %p266
        %p406 = pneg %p263
        %s407 = smul.u32 2, %s31
        %p408 = scmp.lt.s32.totalorder %s407, 3
        %s409 = scalar_select %p408, %s407, 3
        %s410 = smul.addr %s409, 8
        %s411 = scalar_lea.vmem %s9, %s410
        %s412 = smul.u32 2, %s31
        %s413 = smul.u32 2, %s31
        %s414 = smul.u32 2, %s31
        %s415 = smul.u32 2, %s31
        %p416 = scmp.lt.s32.totalorder %s415, 3
        %s417 = scalar_select %p416, %s415, 3
        %s418 = smul.addr %s417, 4
        %s419 = scalar_lea.vmem %s7, %s418
        %s420 = smul.u32 2, %s31
        %s421 = smul.u32 2, %s31
        %p422 = scmp.lt.s32.totalorder %s421, 3
        %s423 = scalar_select %p422, %s421, 3
        %s424 = smul.addr %s423, 4
        %s425 = scalar_lea.vmem %s8, %s424
        %s426 = smul.u32 2, %s31
        %s427 = smul.u32 2, %s31
        %p428 = scmp.lt.s32.totalorder %s427, 3
        %s429 = scalar_select %p428, %s427, 3
        %s430 = smul.addr %s429, 8
        %s431 = scalar_lea.vmem %s9, %s430
        %s432 = smul.u32 2, %s31
        %v434 = vld [vmem:[%s349] sm:$0xf]
        %v435 = vld [vmem:[%s349 + $0x4] sm:$0xf]
        %v436 = vld [vmem:[#allocation5] sm:$0xff]
        %v437 = vld [vmem:[#allocation5 + $0x8] sm:$0xff]
        %v438 = vld [vmem:[#allocation5 + $0x10] sm:$0xff]
        %v439 = vld [vmem:[#allocation5 + $0x18] sm:$0xff]
        %v442 = vunpack.c.l.b16 %v434
        %v443 = vunpack.c.l.b16 %v435
        %v444 = vpack.c.b16 %v443, %v442
        %v449 = vunpack.c.l.b16 %v436
        %v450 = vunpack.c.h.b16 %v436
        %v451 = vunpack.c.l.b16 %v437
        %v452 = vunpack.c.h.b16 %v437
        %v453 = vunpack.c.l.b16 %v438
        %v454 = vunpack.c.h.b16 %v438
        %v455 = vunpack.c.l.b16 %v439
        %v456 = vunpack.c.h.b16 %v439
        %v457 = vpack.c.b16 %v451, %v449
        %v458 = vpack.c.b16 %v452, %v450
        %v459 = vpack.c.b16 %v455, %v453
        %v460 = vpack.c.b16 %v456, %v454
        %vm465 = vcmask 261120
        %v467 = vsel %vm465, %v444, 0
        %469 = vmatprep.subr.bf16.mxu0 0
        %470 = vmatpush1.bf16.msra.mxu0 0
        %471 = vmatprep.subr.bf16.mxu0 0
        %472 = vmatpush1.bf16.msra.mxu0 0
        %473 = vmatprep.subr.bf16.mxu0 0
        %474 = vmatpush1.bf16.msra.mxu0 0
        %475 = vmatprep.subr.bf16.mxu0 0
        %476 = vmatpush1.bf16.msra.mxu0 0
        %477 = vmatprep.subr.bf16.mxu0 0
        %478 = vmatpush1.bf16.msra.mxu0 0
        %479 = vmatprep.subr.bf16.mxu0 0
        %480 = vmatpush1.bf16.msra.mxu0 0
        %481 = vmatprep.subr.bf16.mxu0 %v460
        %482 = vmatpush1.bf16.msra.mxu0 %v459
        %483 = vmatprep.subr.bf16.mxu0 %v458
        %484 = vmatpush1.bf16.msra.mxu0 %v457
        %485 = vmatprep.subr.bf16.mxu0 0
        %486 = vmatpush2.bf16.msra.mxu0 0
        %487 = vmatprep.subr.bf16.mxu0 0
        %488 = vmatpush2.bf16.msra.mxu0 0
        %489 = vmatprep.subr.bf16.mxu0 0
        %490 = vmatpush2.bf16.msra.mxu0 0
        %491 = vmatprep.subr.bf16.mxu0 0
        %492 = vmatpush2.bf16.msra.mxu0 0
        %493 = vmatprep.subr.bf16.mxu0 0
        %494 = vmatpush2.bf16.msra.mxu0 0
        %495 = vmatprep.subr.bf16.mxu0 0
        %496 = vmatpush2.bf16.msra.mxu0 0
        %497 = vmatprep.subr.bf16.mxu0 0
        %498 = vmatpush2.bf16.msra.mxu0 0
        %499 = vmatprep.subr.bf16.mxu0 0
        %500 = vmatpush2.bf16.msra.mxu0 0
        %501 = vmatprep.mubr.bf16.mxu0 0
        %502 = vmatmul.mubr.bf16.gmra.mxu0 %v467
        %v503 = vpop.f32.mrf.mxu0
        %v504 = vadd.f32 0.0, %v503
        %v505 = vpop.f32.mrf.mxu0
        %v506 = vadd.f32 0.0, %v505
        %v507 = vpop.f32.mrf.mxu0
        %v508 = vadd.f32 0.0, %v507
        %v509 = vpop.f32.mrf.mxu0
        %v510 = vadd.f32 0.0, %v509
        %511 = vdwg.mxu0
        %v512 = vld [vmem:[%s4] sm:$0x1]
        %v514 = vlaneseq
        %v515 = vshrl.u32 %v514, 7
        %v516 = vsub.s32 0, %v515
        %v517 = vrot.slane %v512, %v516
        %518 = vrot.lane.b32.xlu0 %v517, 96
        %v519 = vpop.permute.xlu0 %518
        %v521 = vadd.f32 %v504, %v519
        %v522 = vadd.f32 %v508, %v519
        %v523 = vmax.f32 %v521, 0.0
        %v524 = vmax.f32 %v522, 0.0
        %v525 = vand.u32 2147483647, %v521
        %v526 = vand.u32 2147483647, %v522
        %v527 = vsub.f32 0.0, %v525
        %v528 = vsub.f32 0.0, %v526
        %v529 = vmul.f32 %v527, 1.442695
        %v530 = vpow.pop %v529
        %v531 = vmul.f32 %v528, 1.442695
        %v532 = vpow.pop %v531
        %v533 = vadd.f32 %v530, 1.0
        %v534 = vlog2.pop %v533
        %v535 = vmul.f32 %v534, 0.6931472
        %v536 = vmul.f32 -0.5, %v530
        %v537 = vadd.f32 %v536, 1.0
        %v538 = vmul.f32 %v537, %v530
        %v539 = vand.u32 2147483647, %v530
        %vm540 = vcmp.lt.f32.partialorder %v539, 0.0004427343
        %v541 = vsel %vm540, %v538, %v535
        %v542 = vadd.f32 %v532, 1.0
        %v543 = vlog2.pop %v542
        %v544 = vmul.f32 %v543, 0.6931472
        %v545 = vmul.f32 -0.5, %v532
        %v546 = vadd.f32 %v545, 1.0
        %v547 = vmul.f32 %v546, %v532
        %v548 = vand.u32 2147483647, %v532
        %vm549 = vcmp.lt.f32.partialorder %v548, 0.0004427343
        %v550 = vsel %vm549, %v547, %v544
        %v551 = vadd.f32 %v523, %v541
        %v552 = vadd.f32 %v524, %v550
        %v553 = vlaneseq
        %v554 = vshrl.u32 %v553, 7
        %v555 = vadd.s32 %v554, 8
        %vm556 = vcmp.lt.s32.totalorder %v554, 0
        %v557 = vsub.s32 0, %v554
        %v558 = vsel %vm556, %v557, %v554
        %v559 = vshrl.u32 %v558, 4
        %v560 = vand.u32 %v558, 15
        %v561 = vsub.s32 0, %v560
        %v562 = vsel %vm556, %v561, %v560
        %vm563 = vcmp.lt.s32.totalorder %v555, 0
        %v564 = vsub.s32 0, %v555
        %v565 = vsel %vm563, %v564, %v555
        %v566 = vshrl.u32 %v565, 4
        %v567 = vand.u32 %v565, 15
        %v568 = vsub.s32 0, %v567
        %v569 = vsel %vm563, %v568, %v567
        %vm570 = vcmp.ne.s32.totalorder %v562, 0
        %vm571 = vcmp.ne.s32.totalorder %v569, 0
        %vm572 = vcmp.lt.s32.totalorder %v562, 0
        %vm573 = vcmp.lt.s32.totalorder %v569, 0
        %vm574 = vmand %vm572, %vm570
        %vm575 = vmand %vm573, %vm571
        %v576 = vadd.s32 %v562, 16
        %v577 = vadd.s32 %v569, 16
        %v578 = vsel %vm574, %v576, %v562
        %v579 = vsel %vm575, %v577, %v569
        %v580 = vld [vmem:[%s3] sm:$0x1]
        %v582 = vlaneseq
        %v583 = vshrl.u32 %v582, 7
        %v584 = vsub.s32 0, %v583
        %v585 = vrot.slane %v580, %v584
        %v587 = vrot.slane %v506, 5
        %v588 = vrot.slane %v510, 5
        %vm589 = vcmp.lt.s32.totalorder %v554, 3
        %v590 = vsel %vm589, %v587, %v588
        %v591 = vsel %vm589, %v588, %v587
        %v592 = vadd.s32 %v578, 4294967293
        %v593 = vadd.s32 %v579, 4294967293
        %vm594 = vcmp.ge.s32.totalorder %v592, 0
        %vm595 = vcmp.ge.s32.totalorder %v593, 0
        %vm596 = vcmp.lt.s32.totalorder %v592, 16
        %vm597 = vcmp.lt.s32.totalorder %v593, 16
        %vm598 = vmand %vm594, %vm596
        %vm599 = vmand %vm595, %vm597
        %v600 = vsel %vm598, 1, 0
        %v601 = vsel %vm599, 1, 0
        %vm602 = vcmp.eq.s32.totalorder %v600, 1
        %vm603 = vcmp.eq.s32.totalorder %v601, 1
        %v604 = vsel %vm602, %v591, 0.0
        %v605 = vsel %vm603, %v590, 0.0
        %v606 = vpack.c.bf16 %v605, %v604
        %v607 = vld [vmem:[#allocation7] sm:$0xf]
        %v608 = vld [vmem:[#allocation7 + $0x4] sm:$0xf]
        %v609 = vld [vmem:[#allocation7 + $0x8] sm:$0xf]
        %v610 = vld [vmem:[#allocation7 + $0xc] sm:$0xf]
        %v611 = vld [vmem:[#allocation7 + $0x10] sm:$0xf]
        %v612 = vld [vmem:[#allocation7 + $0x14] sm:$0xf]
        %v613 = vld [vmem:[#allocation7 + $0x18] sm:$0xf]
        %v614 = vld [vmem:[#allocation7 + $0x1c] sm:$0xf]
        %v623 = vunpack.c.l.b16 %v607
        %v624 = vunpack.c.l.b16 %v608
        %v625 = vunpack.c.l.b16 %v609
        %v626 = vunpack.c.l.b16 %v610
        %v627 = vunpack.c.l.b16 %v611
        %v628 = vunpack.c.l.b16 %v612
        %v629 = vunpack.c.l.b16 %v613
        %v630 = vunpack.c.l.b16 %v614
        %v631 = vpack.c.b16 %v624, %v623
        %v632 = vpack.c.b16 %v626, %v625
        %v633 = vpack.c.b16 %v628, %v627
        %v634 = vpack.c.b16 %v630, %v629
        %vm639 = vcmask 523264
        %v641 = vsel %vm639, %v606, 0
        %643 = vmatprep.subr.bf16.mxu0 0
        %644 = vmatpush1.bf16.msra.mxu0 0
        %645 = vmatprep.subr.bf16.mxu0 0
        %646 = vmatpush1.bf16.msra.mxu0 0
        %647 = vmatprep.subr.bf16.mxu0 0
        %648 = vmatpush1.bf16.msra.mxu0 0
        %649 = vmatprep.subr.bf16.mxu0 0
        %650 = vmatpush1.bf16.msra.mxu0 0
        %651 = vmatprep.subr.bf16.mxu0 0
        %652 = vmatpush1.bf16.msra.mxu0 %v634
        %653 = vmatprep.subr.bf16.mxu0 0
        %654 = vmatpush1.bf16.msra.mxu0 %v633
        %655 = vmatprep.subr.bf16.mxu0 0
        %656 = vmatpush1.bf16.msra.mxu0 %v632
        %657 = vmatprep.subr.bf16.mxu0 0
        %658 = vmatpush1.bf16.msra.mxu0 %v631
        %659 = vmatprep.subr.bf16.mxu0 0
        %660 = vmatpush2.bf16.msra.mxu0 0
        %661 = vmatprep.subr.bf16.mxu0 0
        %662 = vmatpush2.bf16.msra.mxu0 0
        %663 = vmatprep.subr.bf16.mxu0 0
        %664 = vmatpush2.bf16.msra.mxu0 0
        %665 = vmatprep.subr.bf16.mxu0 0
        %666 = vmatpush2.bf16.msra.mxu0 0
        %667 = vmatprep.subr.bf16.mxu0 0
        %668 = vmatpush2.bf16.msra.mxu0 0
        %669 = vmatprep.subr.bf16.mxu0 0
        %670 = vmatpush2.bf16.msra.mxu0 0
        %671 = vmatprep.subr.bf16.mxu0 0
        %672 = vmatpush2.bf16.msra.mxu0 0
        %673 = vmatprep.subr.bf16.mxu0 0
        %674 = vmatpush2.bf16.msra.mxu0 0
        %675 = vmatprep.mubr.bf16.mxu0 0
        %676 = vmatmul.mubr.bf16.gmra.mxu0 %v641
        %v677 = vpop.f32.mrf.mxu0
        %v678 = vadd.f32 0.0, %v677
        %v679 = vpop.f32.mrf.mxu0
        %v680 = vpop.f32.mrf.mxu0
        %v681 = vadd.f32 0.0, %v680
        %v682 = vpop.f32.mrf.mxu0
        %683 = vdwg.mxu0
        %v684 = vadd.f32 %v585, %v678
        %v685 = vadd.f32 %v585, %v681
        %v686 = vrot.slane %v506, 6
        %v687 = vrot.slane %v510, 6
        %vm688 = vcmp.lt.s32.totalorder %v554, 2
        %v689 = vsel %vm688, %v686, %v687
        %v690 = vsel %vm688, %v687, %v686
        %v691 = vadd.s32 %v578, 4294967294
        %v692 = vadd.s32 %v579, 4294967294
        %vm693 = vcmp.ge.s32.totalorder %v691, 0
        %vm694 = vcmp.ge.s32.totalorder %v692, 0
        %vm695 = vcmp.lt.s32.totalorder %v691, 16
        %vm696 = vcmp.lt.s32.totalorder %v692, 16
        %vm697 = vmand %vm693, %vm695
        %vm698 = vmand %vm694, %vm696
        %v699 = vsel %vm697, 1, 0
        %v700 = vsel %vm698, 1, 0
        %vm701 = vcmp.eq.s32.totalorder %v699, 1
        %vm702 = vcmp.eq.s32.totalorder %v700, 1
        %v703 = vsel %vm701, %v690, 0.0
        %v704 = vsel %vm702, %v689, 0.0
        %v705 = vpack.c.bf16 %v704, %v703
        %s706 = scalar_lea.vmem [#allocation7], 32
        %v707 = vld [vmem:[%s706] sm:$0xf]
        %v708 = vld [vmem:[%s706 + $0x4] sm:$0xf]
        %v709 = vld [vmem:[%s706 + $0x8] sm:$0xf]
        %v710 = vld [vmem:[%s706 + $0xc] sm:$0xf]
        %v711 = vld [vmem:[%s706 + $0x10] sm:$0xf]
        %v712 = vld [vmem:[%s706 + $0x14] sm:$0xf]
        %v713 = vld [vmem:[%s706 + $0x18] sm:$0xf]
        %v714 = vld [vmem:[%s706 + $0x1c] sm:$0xf]
        %v723 = vunpack.c.l.b16 %v707
        %v724 = vunpack.c.l.b16 %v708
        %v725 = vunpack.c.l.b16 %v709
        %v726 = vunpack.c.l.b16 %v710
        %v727 = vunpack.c.l.b16 %v711
        %v728 = vunpack.c.l.b16 %v712
        %v729 = vunpack.c.l.b16 %v713
        %v730 = vunpack.c.l.b16 %v714
        %v731 = vpack.c.b16 %v724, %v723
        %v732 = vpack.c.b16 %v726, %v725
        %v733 = vpack.c.b16 %v728, %v727
        %v734 = vpack.c.b16 %v730, %v729
        %v740 = vsel %vm639, %v705, 0
        %742 = vmatprep.subr.bf16.mxu0 0
        %743 = vmatpush1.bf16.msra.mxu0 0
        %744 = vmatprep.subr.bf16.mxu0 0
        %745 = vmatpush1.bf16.msra.mxu0 0
        %746 = vmatprep.subr.bf16.mxu0 0
        %747 = vmatpush1.bf16.msra.mxu0 0
        %748 = vmatprep.subr.bf16.mxu0 0
        %749 = vmatpush1.bf16.msra.mxu0 0
        %750 = vmatprep.subr.bf16.mxu0 0
        %751 = vmatpush1.bf16.msra.mxu0 %v734
        %752 = vmatprep.subr.bf16.mxu0 0
        %753 = vmatpush1.bf16.msra.mxu0 %v733
        %754 = vmatprep.subr.bf16.mxu0 0
        %755 = vmatpush1.bf16.msra.mxu0 %v732
        %756 = vmatprep.subr.bf16.mxu0 0
        %757 = vmatpush1.bf16.msra.mxu0 %v731
        %758 = vmatprep.subr.bf16.mxu0 0
        %759 = vmatpush2.bf16.msra.mxu0 0
        %760 = vmatprep.subr.bf16.mxu0 0
        %761 = vmatpush2.bf16.msra.mxu0 0
        %762 = vmatprep.subr.bf16.mxu0 0
        %763 = vmatpush2.bf16.msra.mxu0 0
        %764 = vmatprep.subr.bf16.mxu0 0
        %765 = vmatpush2.bf16.msra.mxu0 0
        %766 = vmatprep.subr.bf16.mxu0 0
        %767 = vmatpush2.bf16.msra.mxu0 0
        %768 = vmatprep.subr.bf16.mxu0 0
        %769 = vmatpush2.bf16.msra.mxu0 0
        %770 = vmatprep.subr.bf16.mxu0 0
        %771 = vmatpush2.bf16.msra.mxu0 0
        %772 = vmatprep.subr.bf16.mxu0 0
        %773 = vmatpush2.bf16.msra.mxu0 0
        %774 = vmatprep.mubr.bf16.mxu0 0
        %775 = vmatmul.mubr.bf16.gmra.mxu0 %v740
        %v776 = vpop.f32.mrf.mxu0
        %v777 = vadd.f32 0.0, %v776
        %v778 = vpop.f32.mrf.mxu0
        %v779 = vpop.f32.mrf.mxu0
        %v780 = vadd.f32 0.0, %v779
        %v781 = vpop.f32.mrf.mxu0
        %782 = vdwg.mxu0
        %v783 = vadd.f32 %v684, %v777
        %v784 = vadd.f32 %v685, %v780
        %v785 = vrot.slane %v506, 7
        %v786 = vrot.slane %v510, 7
        %vm787 = vcmp.lt.s32.totalorder %v554, 1
        %v788 = vsel %vm787, %v785, %v786
        %v789 = vsel %vm787, %v786, %v785
        %v790 = vadd.s32 %v578, 4294967295
        %v791 = vadd.s32 %v579, 4294967295
        %vm792 = vcmp.ge.s32.totalorder %v790, 0
        %vm793 = vcmp.ge.s32.totalorder %v791, 0
        %vm794 = vcmp.lt.s32.totalorder %v790, 16
        %vm795 = vcmp.lt.s32.totalorder %v791, 16
        %vm796 = vmand %vm792, %vm794
        %vm797 = vmand %vm793, %vm795
        %v798 = vsel %vm796, 1, 0
        %v799 = vsel %vm797, 1, 0
        %vm800 = vcmp.eq.s32.totalorder %v798, 1
        %vm801 = vcmp.eq.s32.totalorder %v799, 1
        %v802 = vsel %vm800, %v789, 0.0
        %v803 = vsel %vm801, %v788, 0.0
        %v804 = vpack.c.bf16 %v803, %v802
        %s805 = scalar_lea.vmem [#allocation7], 64
        %v806 = vld [vmem:[%s805] sm:$0xf]
        %v807 = vld [vmem:[%s805 + $0x4] sm:$0xf]
        %v808 = vld [vmem:[%s805 + $0x8] sm:$0xf]
        %v809 = vld [vmem:[%s805 + $0xc] sm:$0xf]
        %v810 = vld [vmem:[%s805 + $0x10] sm:$0xf]
        %v811 = vld [vmem:[%s805 + $0x14] sm:$0xf]
        %v812 = vld [vmem:[%s805 + $0x18] sm:$0xf]
        %v813 = vld [vmem:[%s805 + $0x1c] sm:$0xf]
        %v822 = vunpack.c.l.b16 %v806
        %v823 = vunpack.c.l.b16 %v807
        %v824 = vunpack.c.l.b16 %v808
        %v825 = vunpack.c.l.b16 %v809
        %v826 = vunpack.c.l.b16 %v810
        %v827 = vunpack.c.l.b16 %v811
        %v828 = vunpack.c.l.b16 %v812
        %v829 = vunpack.c.l.b16 %v813
        %v830 = vpack.c.b16 %v823, %v822
        %v831 = vpack.c.b16 %v825, %v824
        %v832 = vpack.c.b16 %v827, %v826
        %v833 = vpack.c.b16 %v829, %v828
        %v839 = vsel %vm639, %v804, 0
        %841 = vmatprep.subr.bf16.mxu0 0
        %842 = vmatpush1.bf16.msra.mxu0 0
        %843 = vmatprep.subr.bf16.mxu0 0
        %844 = vmatpush1.bf16.msra.mxu0 0
        %845 = vmatprep.subr.bf16.mxu0 0
        %846 = vmatpush1.bf16.msra.mxu0 0
        %847 = vmatprep.subr.bf16.mxu0 0
        %848 = vmatpush1.bf16.msra.mxu0 0
        %849 = vmatprep.subr.bf16.mxu0 0
        %850 = vmatpush1.bf16.msra.mxu0 %v833
        %851 = vmatprep.subr.bf16.mxu0 0
        %852 = vmatpush1.bf16.msra.mxu0 %v832
        %853 = vmatprep.subr.bf16.mxu0 0
        %854 = vmatpush1.bf16.msra.mxu0 %v831
        %855 = vmatprep.subr.bf16.mxu0 0
        %856 = vmatpush1.bf16.msra.mxu0 %v830
        %857 = vmatprep.subr.bf16.mxu0 0
        %858 = vmatpush2.bf16.msra.mxu0 0
        %859 = vmatprep.subr.bf16.mxu0 0
        %860 = vmatpush2.bf16.msra.mxu0 0
        %861 = vmatprep.subr.bf16.mxu0 0
        %862 = vmatpush2.bf16.msra.mxu0 0
        %863 = vmatprep.subr.bf16.mxu0 0
        %864 = vmatpush2.bf16.msra.mxu0 0
        %865 = vmatprep.subr.bf16.mxu0 0
        %866 = vmatpush2.bf16.msra.mxu0 0
        %867 = vmatprep.subr.bf16.mxu0 0
        %868 = vmatpush2.bf16.msra.mxu0 0
        %869 = vmatprep.subr.bf16.mxu0 0
        %870 = vmatpush2.bf16.msra.mxu0 0
        %871 = vmatprep.subr.bf16.mxu0 0
        %872 = vmatpush2.bf16.msra.mxu0 0
        %873 = vmatprep.mubr.bf16.mxu0 0
        %874 = vmatmul.mubr.bf16.gmra.mxu0 %v839
        %v875 = vpop.f32.mrf.mxu0
        %v876 = vadd.f32 0.0, %v875
        %v877 = vpop.f32.mrf.mxu0
        %v878 = vpop.f32.mrf.mxu0
        %v879 = vadd.f32 0.0, %v878
        %v880 = vpop.f32.mrf.mxu0
        %881 = vdwg.mxu0
        %v882 = vadd.f32 %v783, %v876
        %v883 = vadd.f32 %v784, %v879
        %vm884 = vcmp.ge.s32.totalorder %v578, 0
        %vm885 = vcmp.ge.s32.totalorder %v579, 0
        %vm886 = vcmp.lt.s32.totalorder %v578, 16
        %vm887 = vcmp.lt.s32.totalorder %v579, 16
        %vm888 = vmand %vm884, %vm886
        %vm889 = vmand %vm885, %vm887
        %v890 = vsel %vm888, 1, 0
        %v891 = vsel %vm889, 1, 0
        %vm892 = vcmp.eq.s32.totalorder %v890, 1
        %vm893 = vcmp.eq.s32.totalorder %v891, 1
        %v894 = vsel %vm892, %v506, 0.0
        %v895 = vsel %vm893, %v510, 0.0
        %v896 = vpack.c.bf16 %v895, %v894
        %s897 = scalar_lea.vmem [#allocation7], 96
        %v898 = vld [vmem:[%s897] sm:$0xf]
        %v899 = vld [vmem:[%s897 + $0x4] sm:$0xf]
        %v900 = vld [vmem:[%s897 + $0x8] sm:$0xf]
        %v901 = vld [vmem:[%s897 + $0xc] sm:$0xf]
        %v902 = vld [vmem:[%s897 + $0x10] sm:$0xf]
        %v903 = vld [vmem:[%s897 + $0x14] sm:$0xf]
        %v904 = vld [vmem:[%s897 + $0x18] sm:$0xf]
        %v905 = vld [vmem:[%s897 + $0x1c] sm:$0xf]
        %v914 = vunpack.c.l.b16 %v898
        %v915 = vunpack.c.l.b16 %v899
        %v916 = vunpack.c.l.b16 %v900
        %v917 = vunpack.c.l.b16 %v901
        %v918 = vunpack.c.l.b16 %v902
        %v919 = vunpack.c.l.b16 %v903
        %v920 = vunpack.c.l.b16 %v904
        %v921 = vunpack.c.l.b16 %v905
        %v922 = vpack.c.b16 %v915, %v914
        %v923 = vpack.c.b16 %v917, %v916
        %v924 = vpack.c.b16 %v919, %v918
        %v925 = vpack.c.b16 %v921, %v920
        %v931 = vsel %vm639, %v896, 0
        %933 = vmatprep.subr.bf16.mxu0 0
        %934 = vmatpush1.bf16.msra.mxu0 0
        %935 = vmatprep.subr.bf16.mxu0 0
        %936 = vmatpush1.bf16.msra.mxu0 0
        %937 = vmatprep.subr.bf16.mxu0 0
        %938 = vmatpush1.bf16.msra.mxu0 0
        %939 = vmatprep.subr.bf16.mxu0 0
        %940 = vmatpush1.bf16.msra.mxu0 0
        %941 = vmatprep.subr.bf16.mxu0 0
        %942 = vmatpush1.bf16.msra.mxu0 %v925
        %943 = vmatprep.subr.bf16.mxu0 0
        %944 = vmatpush1.bf16.msra.mxu0 %v924
        %945 = vmatprep.subr.bf16.mxu0 0
        %946 = vmatpush1.bf16.msra.mxu0 %v923
        %947 = vmatprep.subr.bf16.mxu0 0
        %948 = vmatpush1.bf16.msra.mxu0 %v922
        %949 = vmatprep.subr.bf16.mxu0 0
        %950 = vmatpush2.bf16.msra.mxu0 0
        %951 = vmatprep.subr.bf16.mxu0 0
        %952 = vmatpush2.bf16.msra.mxu0 0
        %953 = vmatprep.subr.bf16.mxu0 0
        %954 = vmatpush2.bf16.msra.mxu0 0
        %955 = vmatprep.subr.bf16.mxu0 0
        %956 = vmatpush2.bf16.msra.mxu0 0
        %957 = vmatprep.subr.bf16.mxu0 0
        %958 = vmatpush2.bf16.msra.mxu0 0
        %959 = vmatprep.subr.bf16.mxu0 0
        %960 = vmatpush2.bf16.msra.mxu0 0
        %961 = vmatprep.subr.bf16.mxu0 0
        %962 = vmatpush2.bf16.msra.mxu0 0
        %963 = vmatprep.subr.bf16.mxu0 0
        %964 = vmatpush2.bf16.msra.mxu0 0
        %965 = vmatprep.mubr.bf16.mxu0 0
        %966 = vmatmul.mubr.bf16.gmra.mxu0 %v931
        %v967 = vpop.f32.mrf.mxu0
        %v968 = vadd.f32 0.0, %v967
        %v969 = vpop.f32.mrf.mxu0
        %v970 = vpop.f32.mrf.mxu0
        %v971 = vadd.f32 0.0, %v970
        %v972 = vpop.f32.mrf.mxu0
        %973 = vdwg.mxu0
        %v974 = vadd.f32 %v882, %v968
        %v975 = vadd.f32 %v883, %v971
        %v976 = vrot.slane %v506, 1
        %v977 = vrot.slane %v510, 1
        %vm978 = vcmp.lt.s32.totalorder %v554, 7
        %v979 = vsel %vm978, %v976, %v977
        %v980 = vsel %vm978, %v977, %v976
        %v981 = vadd.s32 %v578, 1
        %v982 = vadd.s32 %v579, 1
        %vm983 = vcmp.ge.s32.totalorder %v981, 0
        %vm984 = vcmp.ge.s32.totalorder %v982, 0
        %vm985 = vcmp.lt.s32.totalorder %v981, 16
        %vm986 = vcmp.lt.s32.totalorder %v982, 16
        %vm987 = vmand %vm983, %vm985
        %vm988 = vmand %vm984, %vm986
        %v989 = vsel %vm987, 1, 0
        %v990 = vsel %vm988, 1, 0
        %vm991 = vcmp.eq.s32.totalorder %v989, 1
        %vm992 = vcmp.eq.s32.totalorder %v990, 1
        %v993 = vsel %vm991, %v979, 0.0
        %v994 = vsel %vm992, %v980, 0.0
        %v995 = vpack.c.bf16 %v994, %v993
        %s996 = scalar_lea.vmem [#allocation7], 128
        %v997 = vld [vmem:[%s996] sm:$0xf]
        %v998 = vld [vmem:[%s996 + $0x4] sm:$0xf]
        %v999 = vld [vmem:[%s996 + $0x8] sm:$0xf]
        %v1000 = vld [vmem:[%s996 + $0xc] sm:$0xf]
        %v1001 = vld [vmem:[%s996 + $0x10] sm:$0xf]
        %v1002 = vld [vmem:[%s996 + $0x14] sm:$0xf]
        %v1003 = vld [vmem:[%s996 + $0x18] sm:$0xf]
        %v1004 = vld [vmem:[%s996 + $0x1c] sm:$0xf]
        %v1013 = vunpack.c.l.b16 %v997
        %v1014 = vunpack.c.l.b16 %v998
        %v1015 = vunpack.c.l.b16 %v999
        %v1016 = vunpack.c.l.b16 %v1000
        %v1017 = vunpack.c.l.b16 %v1001
        %v1018 = vunpack.c.l.b16 %v1002
        %v1019 = vunpack.c.l.b16 %v1003
        %v1020 = vunpack.c.l.b16 %v1004
        %v1021 = vpack.c.b16 %v1014, %v1013
        %v1022 = vpack.c.b16 %v1016, %v1015
        %v1023 = vpack.c.b16 %v1018, %v1017
        %v1024 = vpack.c.b16 %v1020, %v1019
        %v1030 = vsel %vm639, %v995, 0
        %1032 = vmatprep.subr.bf16.mxu0 0
        %1033 = vmatpush1.bf16.msra.mxu0 0
        %1034 = vmatprep.subr.bf16.mxu0 0
        %1035 = vmatpush1.bf16.msra.mxu0 0
        %1036 = vmatprep.subr.bf16.mxu0 0
        %1037 = vmatpush1.bf16.msra.mxu0 0
        %1038 = vmatprep.subr.bf16.mxu0 0
        %1039 = vmatpush1.bf16.msra.mxu0 0
        %1040 = vmatprep.subr.bf16.mxu0 0
        %1041 = vmatpush1.bf16.msra.mxu0 %v1024
        %1042 = vmatprep.subr.bf16.mxu0 0
        %1043 = vmatpush1.bf16.msra.mxu0 %v1023
        %1044 = vmatprep.subr.bf16.mxu0 0
        %1045 = vmatpush1.bf16.msra.mxu0 %v1022
        %1046 = vmatprep.subr.bf16.mxu0 0
        %1047 = vmatpush1.bf16.msra.mxu0 %v1021
        %1048 = vmatprep.subr.bf16.mxu0 0
        %1049 = vmatpush2.bf16.msra.mxu0 0
        %1050 = vmatprep.subr.bf16.mxu0 0
        %1051 = vmatpush2.bf16.msra.mxu0 0
        %1052 = vmatprep.subr.bf16.mxu0 0
        %1053 = vmatpush2.bf16.msra.mxu0 0
        %1054 = vmatprep.subr.bf16.mxu0 0
        %1055 = vmatpush2.bf16.msra.mxu0 0
        %1056 = vmatprep.subr.bf16.mxu0 0
        %1057 = vmatpush2.bf16.msra.mxu0 0
        %1058 = vmatprep.subr.bf16.mxu0 0
        %1059 = vmatpush2.bf16.msra.mxu0 0
        %1060 = vmatprep.subr.bf16.mxu0 0
        %1061 = vmatpush2.bf16.msra.mxu0 0
        %1062 = vmatprep.subr.bf16.mxu0 0
        %1063 = vmatpush2.bf16.msra.mxu0 0
        %1064 = vmatprep.mubr.bf16.mxu0 0
        %1065 = vmatmul.mubr.bf16.gmra.mxu0 %v1030
        %v1066 = vpop.f32.mrf.mxu0
        %v1067 = vadd.f32 0.0, %v1066
        %v1068 = vpop.f32.mrf.mxu0
        %v1069 = vpop.f32.mrf.mxu0
        %v1070 = vadd.f32 0.0, %v1069
        %v1071 = vpop.f32.mrf.mxu0
        %1072 = vdwg.mxu0
        %v1073 = vadd.f32 %v974, %v1067
        %v1074 = vadd.f32 %v975, %v1070
        %v1075 = vrot.slane %v506, 2
        %v1076 = vrot.slane %v510, 2
        %vm1077 = vcmp.lt.s32.totalorder %v554, 6
        %v1078 = vsel %vm1077, %v1075, %v1076
        %v1079 = vsel %vm1077, %v1076, %v1075
        %v1080 = vadd.s32 %v578, 2
        %v1081 = vadd.s32 %v579, 2
        %vm1082 = vcmp.ge.s32.totalorder %v1080, 0
        %vm1083 = vcmp.ge.s32.totalorder %v1081, 0
        %vm1084 = vcmp.lt.s32.totalorder %v1080, 16
        %vm1085 = vcmp.lt.s32.totalorder %v1081, 16
        %vm1086 = vmand %vm1082, %vm1084
        %vm1087 = vmand %vm1083, %vm1085
        %v1088 = vsel %vm1086, 1, 0
        %v1089 = vsel %vm1087, 1, 0
        %vm1090 = vcmp.eq.s32.totalorder %v1088, 1
        %vm1091 = vcmp.eq.s32.totalorder %v1089, 1
        %v1092 = vsel %vm1090, %v1078, 0.0
        %v1093 = vsel %vm1091, %v1079, 0.0
        %v1094 = vpack.c.bf16 %v1093, %v1092
        %s1095 = scalar_lea.vmem [#allocation7], 160
        %v1096 = vld [vmem:[%s1095] sm:$0xf]
        %v1097 = vld [vmem:[%s1095 + $0x4] sm:$0xf]
        %v1098 = vld [vmem:[%s1095 + $0x8] sm:$0xf]
        %v1099 = vld [vmem:[%s1095 + $0xc] sm:$0xf]
        %v1100 = vld [vmem:[%s1095 + $0x10] sm:$0xf]
        %v1101 = vld [vmem:[%s1095 + $0x14] sm:$0xf]
        %v1102 = vld [vmem:[%s1095 + $0x18] sm:$0xf]
        %v1103 = vld [vmem:[%s1095 + $0x1c] sm:$0xf]
        %v1112 = vunpack.c.l.b16 %v1096
        %v1113 = vunpack.c.l.b16 %v1097
        %v1114 = vunpack.c.l.b16 %v1098
        %v1115 = vunpack.c.l.b16 %v1099
        %v1116 = vunpack.c.l.b16 %v1100
        %v1117 = vunpack.c.l.b16 %v1101
        %v1118 = vunpack.c.l.b16 %v1102
        %v1119 = vunpack.c.l.b16 %v1103
        %v1120 = vpack.c.b16 %v1113, %v1112
        %v1121 = vpack.c.b16 %v1115, %v1114
        %v1122 = vpack.c.b16 %v1117, %v1116
        %v1123 = vpack.c.b16 %v1119, %v1118
        %v1129 = vsel %vm639, %v1094, 0
        %1131 = vmatprep.subr.bf16.mxu0 0
        %1132 = vmatpush1.bf16.msra.mxu0 0
        %1133 = vmatprep.subr.bf16.mxu0 0
        %1134 = vmatpush1.bf16.msra.mxu0 0
        %1135 = vmatprep.subr.bf16.mxu0 0
        %1136 = vmatpush1.bf16.msra.mxu0 0
        %1137 = vmatprep.subr.bf16.mxu0 0
        %1138 = vmatpush1.bf16.msra.mxu0 0
        %1139 = vmatprep.subr.bf16.mxu0 0
        %1140 = vmatpush1.bf16.msra.mxu0 %v1123
        %1141 = vmatprep.subr.bf16.mxu0 0
        %1142 = vmatpush1.bf16.msra.mxu0 %v1122
        %1143 = vmatprep.subr.bf16.mxu0 0
        %1144 = vmatpush1.bf16.msra.mxu0 %v1121
        %1145 = vmatprep.subr.bf16.mxu0 0
        %1146 = vmatpush1.bf16.msra.mxu0 %v1120
        %1147 = vmatprep.subr.bf16.mxu0 0
        %1148 = vmatpush2.bf16.msra.mxu0 0
        %1149 = vmatprep.subr.bf16.mxu0 0
        %1150 = vmatpush2.bf16.msra.mxu0 0
        %1151 = vmatprep.subr.bf16.mxu0 0
        %1152 = vmatpush2.bf16.msra.mxu0 0
        %1153 = vmatprep.subr.bf16.mxu0 0
        %1154 = vmatpush2.bf16.msra.mxu0 0
        %1155 = vmatprep.subr.bf16.mxu0 0
        %1156 = vmatpush2.bf16.msra.mxu0 0
        %1157 = vmatprep.subr.bf16.mxu0 0
        %1158 = vmatpush2.bf16.msra.mxu0 0
        %1159 = vmatprep.subr.bf16.mxu0 0
        %1160 = vmatpush2.bf16.msra.mxu0 0
        %1161 = vmatprep.subr.bf16.mxu0 0
        %1162 = vmatpush2.bf16.msra.mxu0 0
        %1163 = vmatprep.mubr.bf16.mxu0 0
        %1164 = vmatmul.mubr.bf16.gmra.mxu0 %v1129
        %v1165 = vpop.f32.mrf.mxu0
        %v1166 = vadd.f32 0.0, %v1165
        %v1167 = vpop.f32.mrf.mxu0
        %v1168 = vpop.f32.mrf.mxu0
        %v1169 = vadd.f32 0.0, %v1168
        %v1170 = vpop.f32.mrf.mxu0
        %1171 = vdwg.mxu0
        %v1172 = vadd.f32 %v1073, %v1166
        %v1173 = vadd.f32 %v1074, %v1169
        %v1174 = vrot.slane %v506, 3
        %v1175 = vrot.slane %v510, 3
        %vm1176 = vcmp.lt.s32.totalorder %v554, 5
        %v1177 = vsel %vm1176, %v1174, %v1175
        %v1178 = vsel %vm1176, %v1175, %v1174
        %v1179 = vadd.s32 %v578, 3
        %v1180 = vadd.s32 %v579, 3
        %vm1181 = vcmp.ge.s32.totalorder %v1179, 0
        %vm1182 = vcmp.ge.s32.totalorder %v1180, 0
        %vm1183 = vcmp.lt.s32.totalorder %v1179, 16
        %vm1184 = vcmp.lt.s32.totalorder %v1180, 16
        %vm1185 = vmand %vm1181, %vm1183
        %vm1186 = vmand %vm1182, %vm1184
        %v1187 = vsel %vm1185, 1, 0
        %v1188 = vsel %vm1186, 1, 0
        %vm1189 = vcmp.eq.s32.totalorder %v1187, 1
        %vm1190 = vcmp.eq.s32.totalorder %v1188, 1
        %v1191 = vsel %vm1189, %v1177, 0.0
        %v1192 = vsel %vm1190, %v1178, 0.0
        %v1193 = vpack.c.bf16 %v1192, %v1191
        %s1194 = scalar_lea.vmem [#allocation7], 192
        %v1195 = vld [vmem:[%s1194] sm:$0xf]
        %v1196 = vld [vmem:[%s1194 + $0x4] sm:$0xf]
        %v1197 = vld [vmem:[%s1194 + $0x8] sm:$0xf]
        %v1198 = vld [vmem:[%s1194 + $0xc] sm:$0xf]
        %v1199 = vld [vmem:[%s1194 + $0x10] sm:$0xf]
        %v1200 = vld [vmem:[%s1194 + $0x14] sm:$0xf]
        %v1201 = vld [vmem:[%s1194 + $0x18] sm:$0xf]
        %v1202 = vld [vmem:[%s1194 + $0x1c] sm:$0xf]
        %v1211 = vunpack.c.l.b16 %v1195
        %v1212 = vunpack.c.l.b16 %v1196
        %v1213 = vunpack.c.l.b16 %v1197
        %v1214 = vunpack.c.l.b16 %v1198
        %v1215 = vunpack.c.l.b16 %v1199
        %v1216 = vunpack.c.l.b16 %v1200
        %v1217 = vunpack.c.l.b16 %v1201
        %v1218 = vunpack.c.l.b16 %v1202
        %v1219 = vpack.c.b16 %v1212, %v1211
        %v1220 = vpack.c.b16 %v1214, %v1213
        %v1221 = vpack.c.b16 %v1216, %v1215
        %v1222 = vpack.c.b16 %v1218, %v1217
        %v1228 = vsel %vm639, %v1193, 0
        %1230 = vmatprep.subr.bf16.mxu0 0
        %1231 = vmatpush1.bf16.msra.mxu0 0
        %1232 = vmatprep.subr.bf16.mxu0 0
        %1233 = vmatpush1.bf16.msra.mxu0 0
        %1234 = vmatprep.subr.bf16.mxu0 0
        %1235 = vmatpush1.bf16.msra.mxu0 0
        %1236 = vmatprep.subr.bf16.mxu0 0
        %1237 = vmatpush1.bf16.msra.mxu0 0
        %1238 = vmatprep.subr.bf16.mxu0 0
        %1239 = vmatpush1.bf16.msra.mxu0 %v1222
        %1240 = vmatprep.subr.bf16.mxu0 0
        %1241 = vmatpush1.bf16.msra.mxu0 %v1221
        %1242 = vmatprep.subr.bf16.mxu0 0
        %1243 = vmatpush1.bf16.msra.mxu0 %v1220
        %1244 = vmatprep.subr.bf16.mxu0 0
        %1245 = vmatpush1.bf16.msra.mxu0 %v1219
        %1246 = vmatprep.subr.bf16.mxu0 0
        %1247 = vmatpush2.bf16.msra.mxu0 0
        %1248 = vmatprep.subr.bf16.mxu0 0
        %1249 = vmatpush2.bf16.msra.mxu0 0
        %1250 = vmatprep.subr.bf16.mxu0 0
        %1251 = vmatpush2.bf16.msra.mxu0 0
        %1252 = vmatprep.subr.bf16.mxu0 0
        %1253 = vmatpush2.bf16.msra.mxu0 0
        %1254 = vmatprep.subr.bf16.mxu0 0
        %1255 = vmatpush2.bf16.msra.mxu0 0
        %1256 = vmatprep.subr.bf16.mxu0 0
        %1257 = vmatpush2.bf16.msra.mxu0 0
        %1258 = vmatprep.subr.bf16.mxu0 0
        %1259 = vmatpush2.bf16.msra.mxu0 0
        %1260 = vmatprep.subr.bf16.mxu0 0
        %1261 = vmatpush2.bf16.msra.mxu0 0
        %1262 = vmatprep.mubr.bf16.mxu0 0
        %1263 = vmatmul.mubr.bf16.gmra.mxu0 %v1228
        %v1264 = vpop.f32.mrf.mxu0
        %v1265 = vadd.f32 0.0, %v1264
        %v1266 = vpop.f32.mrf.mxu0
        %v1267 = vpop.f32.mrf.mxu0
        %v1268 = vadd.f32 0.0, %v1267
        %v1269 = vpop.f32.mrf.mxu0
        %1270 = vdwg.mxu0
        %v1271 = vadd.f32 %v1172, %v1265
        %v1272 = vadd.f32 %v1173, %v1268
        %v1273 = vsub.f32 0.0, %v1271
        %v1274 = vsub.f32 0.0, %v1272
        %v1275 = vmul.f32 %v1273, 1.442695
        %v1276 = vpow.pop %v1275
        %v1277 = vmul.f32 %v1274, 1.442695
        %v1278 = vpow.pop %v1277
        %v1279 = vadd.f32 %v1276, 1.0
        %v1280 = vadd.f32 %v1278, 1.0
        %v1281 = vrcp.pop %v1279
        %v1282 = vrcp.pop %v1280
        %v1283 = vmul.f32 %v1271, %v1281
        %v1284 = vmul.f32 %v1272, %v1282
        %v1285 = vpack.c.bf16 %v508, %v504
        %v1287 = vunpack.c.l.b16 %v1285
        %v1288 = vunpack.c.h.b16 %v1285
        %v1289 = vpack.c.b16 %v1287, %v1287
        %v1290 = vpack.c.b16 %v1288, %v1288
        %vm1293 = vcmask 519168
        %1294 = vst.msk [vmem:[%s383] sm:$0xf] %vm1293, %v1289
        %1295 = vst.msk [vmem:[%s383 + $0x4] sm:$0xf] %vm1293, %v1290
        %v1296 = vpack.c.bf16 %v1284, %v1283
        %v1298 = vunpack.c.l.b16 %v1296
        %v1299 = vunpack.c.h.b16 %v1296
        %v1300 = vpack.c.b16 %v1298, %v1298
        %v1301 = vpack.c.b16 %v1299, %v1299
        %1304 = vst.msk [vmem:[%s390] sm:$0xf] %vm1293, %v1300
        %1305 = vst.msk [vmem:[%s390 + $0x4] sm:$0xf] %vm1293, %v1301
        %1306 = vrot.lane.b32.xlu0 %v1289, 64
        %v1307 = vpop.permute.xlu0 %1306
        %1308 = vrot.lane.b32.xlu0 %v1290, 64
        %v1309 = vpop.permute.xlu0 %1308
        %vm1312 = vcmask 125952
        %1313 = vst.msk [vmem:[%s419] sm:$0xf] %vm1312, %v1307
        %1314 = vst.msk [vmem:[%s419 + $0x4] sm:$0xf] %vm1312, %v1309
        %1315 = vrot.lane.b32.xlu0 %v1289, 48
        %v1316 = vpop.permute.xlu0 %1315
        %1317 = vrot.lane.b32.xlu0 %v1290, 48
        %v1318 = vpop.permute.xlu0 %1317
        %1321 = vst.msk [vmem:[%s425] sm:$0xf] %vm1312, %v1316
        %1322 = vst.msk [vmem:[%s425 + $0x4] sm:$0xf] %vm1312, %v1318
        %1325 = vrot.lane.b32.xlu0 %v551, 32
        %v1326 = vpop.permute.xlu0 %1325
        %1327 = vrot.lane.b32.xlu0 %v552, 32
        %v1328 = vpop.permute.xlu0 %1327
        %vm1331 = vcmask 64512
        %1332 = vst.msk [vmem:[%s431] sm:$0xff] %vm1331, %v1326
        %1333 = vst.msk [vmem:[%s431 + $0x8] sm:$0xff] %vm1331, %v1328
        %s1334 = sand.u32 %s149, 1
        %s1335 = scalar_lea.sflag [#allocation4], %s1334
        %s1336 = sand.u32 %s149, 1
        %s1337 = smul.addr %s1336, 8
        %s1338 = scalar_lea.vmem [#allocation8], %s1337
        %s1339 = sand.u32 %s175, 1
        %s1340 = scalar_lea.sflag [#allocation10], %s1339
        %s1341 = sand.u32 %s175, 1
        %s1342 = smul.addr %s1341, 8
        %s1343 = scalar_lea.vmem [#allocation9], %s1342
        %s1344 = smul.u32 2, %s31
        %p1345 = scmp.lt.s32.totalorder %s1344, 3
        %s1346 = scalar_select %p1345, %s1344, 3
        %s1347 = smul.addr %s1346, 4
        %s1348 = scalar_lea.vmem %s7, %s1347
        %s1349 = smul.u32 2, %s31
        %p1350 = scmp.lt.s32.totalorder %s1349, 3
        %s1351 = scalar_select %p1350, %s1349, 3
        %s1352 = smul.addr %s1351, 4
        %s1353 = scalar_lea.vmem %s8, %s1352
        %s1354 = smul.u32 2, %s31
        %p1355 = scmp.lt.s32.totalorder %s1354, 3
        %s1356 = scalar_select %p1355, %s1354, 3
        %s1357 = smul.addr %s1356, 8
        %s1358 = scalar_lea.vmem %s9, %s1357
        // Predicated region
        $region53: #{tpu_custom_call.1} parent=39 // pred_check
          %p1359 = pneg %p159
        $region54: #{tpu_custom_call.1} parent=39 // pred_check_branch
          %1361 = sbr.rel (%p1359) target = $region56
        $region55: #{tpu_custom_call.1} parent=39 // pred_region
          %s1362 = smul.u32 2, %s31
          %s1364 = ssub.s32 128, 128
          %1365 = vsyncadd %s1335, %s1364
          %s1366 = smul.addr %s1362, 64
          %s1367 = scalar_lea.hbm %s5, %s1366
          %s1368 = sshll.u32 %s1338, 4
          %s1369 = int_to_ptr.vmem [resolvable:$true] %s1368
          %1374 = dma.vmem_to_hbm [thread:$0]  %s1369, 128, %s1367, %s1335, 64, 64, 4
        $region56: #{tpu_custom_call.1} parent=39 // pred_fallthru
          _
        // Predicated region
        $region57: #{tpu_custom_call.1} parent=39 // pred_check
          %p1375 = pneg %p185
        $region58: #{tpu_custom_call.1} parent=39 // pred_check_branch
          %1377 = sbr.rel (%p1375) target = $region60
        $region59: #{tpu_custom_call.1} parent=39 // pred_region
          %s1378 = smul.u32 2, %s31
          %s1380 = ssub.s32 128, 128
          %1381 = vsyncadd %s1340, %s1380
          %s1382 = smul.addr %s1378, 64
          %s1383 = scalar_lea.hbm %s6, %s1382
          %s1384 = sshll.u32 %s1343, 4
          %s1385 = int_to_ptr.vmem [resolvable:$true] %s1384
          %1390 = dma.vmem_to_hbm [thread:$0]  %s1385, 128, %s1383, %s1340, 64, 64, 4
        $region60: #{tpu_custom_call.1} parent=39 // pred_fallthru
          _
        // Predicated region
        $region61: #{tpu_custom_call.1} parent=39 // pred_check
          %p1391 = pneg %p211
        $region62: #{tpu_custom_call.1} parent=39 // pred_check_branch
          %1393 = sbr.rel (%p1391) target = $region64
        $region63: #{tpu_custom_call.1} parent=39 // pred_region
          %s1394 = smul.u32 2, %s31
        $region64: #{tpu_custom_call.1} parent=39 // pred_fallthru
          _
        // Predicated region
        $region65: #{tpu_custom_call.1} parent=39 // pred_check
          %p1395 = pneg %p237
        $region66: #{tpu_custom_call.1} parent=39 // pred_check_branch
          %1397 = sbr.rel (%p1395) target = $region68
        $region67: #{tpu_custom_call.1} parent=39 // pred_region
          %s1398 = smul.u32 2, %s31
        $region68: #{tpu_custom_call.1} parent=39 // pred_fallthru
          _
        // Predicated region
        $region69: #{tpu_custom_call.1} parent=39 // pred_check
          %p1399 = pneg %p263
        $region70: #{tpu_custom_call.1} parent=39 // pred_check_branch
          %1401 = sbr.rel (%p1399) target = $region72
        $region71: #{tpu_custom_call.1} parent=39 // pred_region
          %s1402 = smul.u32 2, %s31
        $region72: #{tpu_custom_call.1} parent=39 // pred_fallthru
          _
      $region40: #{tpu_custom_call.1} parent=5 // pred_fallthru
        _
      %p1403 = scmp.le.s32.totalorder 2, %s26
      // Predicated region
      $region73: #{tpu_custom_call.1} parent=5 // pred_check
        %p1404 = pneg %p1403
      $region74: #{tpu_custom_call.1} parent=5 // pred_check_branch
        %1406 = sbr.rel (%p1404) target = $region76
      $region75: #{tpu_custom_call.1} parent=5 // pred_region
        %s1407 = ssub.s32 %s26, 2
        // Predicated region
        $region77: #{tpu_custom_call.1} parent=75 // pred_check
          %p1408 = pneg %p165
        $region78: #{tpu_custom_call.1} parent=75 // pred_check_branch
          %1410 = sbr.rel (%p1408) target = $region80
        $region79: #{tpu_custom_call.1} parent=75 // pred_region
          %s1411 = sand.u32 %s150, 1
          %s1412 = scalar_lea.sflag [#allocation4], %s1411
          %s1413 = sand.u32 %s150, 1
          %s1414 = smul.addr %s1413, 8
          %s1415 = scalar_lea.vmem [#allocation8], %s1414
          %1416 = dma.done %s1412, 128
        $region80: #{tpu_custom_call.1} parent=75 // pred_fallthru
          _
        // Predicated region
        $region81: #{tpu_custom_call.1} parent=75 // pred_check
          %p1417 = pneg %p191
        $region82: #{tpu_custom_call.1} parent=75 // pred_check_branch
          %1419 = sbr.rel (%p1417) target = $region84
        $region83: #{tpu_custom_call.1} parent=75 // pred_region
          %s1420 = sand.u32 %s176, 1
          %s1421 = scalar_lea.sflag [#allocation10], %s1420
          %s1422 = sand.u32 %s176, 1
          %s1423 = smul.addr %s1422, 8
          %s1424 = scalar_lea.vmem [#allocation9], %s1423
          %1425 = dma.done %s1421, 128
        $region84: #{tpu_custom_call.1} parent=75 // pred_fallthru
          _
        // Predicated region
        $region85: #{tpu_custom_call.1} parent=75 // pred_check
          %p1426 = pneg %p217
        $region86: #{tpu_custom_call.1} parent=75 // pred_check_branch
          %1428 = sbr.rel (%p1426) target = $region88
        $region87: #{tpu_custom_call.1} parent=75 // pred_region
          %s1429 = smul.u32 2, %s32
          %p1430 = scmp.lt.s32.totalorder %s1429, 3
          %s1431 = scalar_select %p1430, %s1429, 3
          %s1432 = smul.addr %s1431, 4
          %s1433 = scalar_lea.vmem %s7, %s1432
        $region88: #{tpu_custom_call.1} parent=75 // pred_fallthru
          _
        // Predicated region
        $region89: #{tpu_custom_call.1} parent=75 // pred_check
          %p1434 = pneg %p243
        $region90: #{tpu_custom_call.1} parent=75 // pred_check_branch
          %1436 = sbr.rel (%p1434) target = $region92
        $region91: #{tpu_custom_call.1} parent=75 // pred_region
          %s1437 = smul.u32 2, %s32
          %p1438 = scmp.lt.s32.totalorder %s1437, 3
          %s1439 = scalar_select %p1438, %s1437, 3
          %s1440 = smul.addr %s1439, 4
          %s1441 = scalar_lea.vmem %s8, %s1440
        $region92: #{tpu_custom_call.1} parent=75 // pred_fallthru
          _
        // Predicated region
        $region93: #{tpu_custom_call.1} parent=75 // pred_check
          %p1442 = pneg %p269
        $region94: #{tpu_custom_call.1} parent=75 // pred_check_branch
          %1444 = sbr.rel (%p1442) target = $region96
        $region95: #{tpu_custom_call.1} parent=75 // pred_region
          %s1445 = smul.u32 2, %s32
          %p1446 = scmp.lt.s32.totalorder %s1445, 3
          %s1447 = scalar_select %p1446, %s1445, 3
          %s1448 = smul.addr %s1447, 8
          %s1449 = scalar_lea.vmem %s9, %s1448
        $region96: #{tpu_custom_call.1} parent=75 // pred_fallthru
          _
      $region76: #{tpu_custom_call.1} parent=5 // pred_fallthru
        _
    $region6: #{tpu_custom_call.1} parent=1 // loop_footer
      %s30 = sadd.s32 1, %s26
    $region7: #{tpu_custom_call.1} parent=1 // loop_footer_branch
      %25 = sbr.rel target = $region3
    $region8: #{tpu_custom_call.1} parent=1 // loop_exit
      _
    %1450 = vsyncpa [#allocation3], 1
    %s1451 = scalar_lea.sflag [#allocation3], 1
    %1452 = vsyncpa %s1451, 1
    %1453 = vsyncpa [#allocation6], 1
    %1454 = vsyncpa [#allocation4], 1
    %s1455 = scalar_lea.sflag [#allocation4], 1
    %1456 = vsyncpa %s1455, 1
    %1457 = vsyncpa [#allocation10], 1
    %s1458 = scalar_lea.sflag [#allocation10], 1
    %1459 = vsyncpa %s1458, 1

</llo_original>
